<compile_context>
chip_gen: v6e
topology: v6e:2x2x1
jax: 0.10.0
libtpu: 0.0.40
codegen_flags: <defaults>
</compile_context>

<pallas_src>
import functools
import math

import jax
import jax.numpy as jnp
from jax.experimental import pallas as pl
from jax.experimental.pallas import tpu as pltpu


# ----------------------------------------------------------------------------
# Fused attack kernel: whole max_steps loop for one batch item per grid step.
# ----------------------------------------------------------------------------
def _make_siadv_kernel(N, H, C, max_steps, coef, eps):
    def kernel(pts_ref, nrm_ref, onehot_ref, w1t_ref, b1_ref, w2_ref, b2_ref,
               adv_ref, logits_ref, pts_scr):
        # ---------- constants for this batch item (hoisted out of the loop) ----------
        nv = nrm_ref[0]                                   # [3, N] unit normals
        nx, ny, nz = nv[0:1, :], nv[1:2, :], nv[2:3, :]
        ori = pts_ref[0]                                  # [3, N] original points
        ox0, oy0, oz0 = ori[0:1, :], ori[1:2, :], ori[2:3, :]
        onehot = onehot_ref[0]                            # [1, C]
        w1t = w1t_ref[...]                                # [H, 3]
        b1 = b1_ref[...]                                  # [H, 1]
        w2 = w2_ref[...]                                  # [H, C]
        b2 = b2_ref[...]                                  # [1, C]
        w1x, w1y, w1z = w1t[:, 0:1], w1t[:, 1:2], w1t[:, 2:3]   # [H, 1] each

        # Spin-axis rotation entries depend only on the normals, which are
        # reused every step (see TODO below), so they are loop-invariant.
        sin_t = nz
        cos_t = jnp.sqrt(jnp.maximum(1.0 - sin_t * sin_t, 0.0) + 1e-10)
        u1 = ny / cos_t
        u2 = -nx / cos_t
        r00 = u1 * u1 + (1.0 - u1 * u1) * sin_t
        r01 = u1 * u2 * (1.0 - sin_t)
        r02 = u2 * cos_t
        r11 = u2 * u2 + (1.0 - u2 * u2) * sin_t
        r12 = -u1 * cos_t
        r22 = sin_t

        def spin_apply(x, y, z):          # spin @ [x; y; z]
            return (r00 * x + r01 * y + r02 * z,
                    r01 * x + r11 * y + r12 * z,
                    -r02 * x - r12 * y + r22 * z)

        def spin_t_apply(x, y, z):        # spin^T @ [x; y; z]
            return (r00 * x + r01 * y - r02 * z,
                    r01 * x + r11 * y - r12 * z,
                    r02 * x + r12 * y + r22 * z)

        def mlp_forward(px, py, pz):
            # Per-point MLP done on the VPU (K=3 is degenerate for the MXU).
            h_pre = w1x * px + w1y * py + w1z * pz + b1            # [H, N]
            h = jnp.maximum(h_pre, 0.0)
            feat = jnp.max(h, axis=1, keepdims=True)               # [H, 1]
            logits = jnp.sum(feat * w2, axis=0, keepdims=True) + b2  # [1, C]
            return h_pre, h, feat, logits

        # Current points stay resident in VMEM across all attack steps.
        pts_scr[...] = ori

        @pl.loop(0, max_steps)
        def _attack_step(step):
            p = pts_scr[...]
            px, py, pz = p[0:1, :], p[1:2, :], p[2:3, :]

            # ---- spin-axis (shape-invariant) transform ----
            itc = px * nx + py * ny + pz * nz                      # intercept [1, N]
            tx, ty, tz = itc * nx, itc * ny, itc * nz              # translation
            sx, sy, sz = spin_apply(px + tx, py + ty, pz + tz)     # new_points
            # reconstructed points fed to the classifier (grad flows wrt s*)
            rx, ry, rz = spin_t_apply(sx, sy, sz)
            rx, ry, rz = rx - tx, ry - ty, rz - tz

            # ---- classifier forward + CW loss (untargeted, kappa=0) ----
            h_pre, h, feat, logits = mlp_forward(rx, ry, rz)
            real = jnp.sum(onehot * logits)
            masked = (1.0 - onehot) * logits - onehot * 10000.0
            other = jnp.max(masked)
            cidx = jax.lax.broadcasted_iota(jnp.int32, (1, C), 1)
            other_arg = jnp.min(jnp.where(masked == other, cidx, C))
            other_1h = (cidx == other_arg).astype(jnp.float32)
            active = jnp.where(real - other > 0.0, 1.0, 0.0)
            dlogits = active * (onehot - other_1h)                 # [1, C]

            # ---- analytic backward ----
            dfeat = jnp.sum(w2 * dlogits, axis=1, keepdims=True)   # [H, 1]
            # max-pool backward: route grad to the first arg-max point per channel
            nidx = jax.lax.broadcasted_iota(jnp.int32, (H, N), 1)
            arg_n = jnp.min(jnp.where(h == feat, nidx, N), axis=1, keepdims=True)
            route = (nidx == arg_n).astype(jnp.float32)            # [H, N]
            dh_pre = route * dfeat * (h_pre > 0.0).astype(jnp.float32)
            # d loss / d reconstructed points: one sublane reduction per xyz row
            drx = jnp.sum(w1x * dh_pre, axis=0, keepdims=True)     # [1, N]
            dry = jnp.sum(w1y * dh_pre, axis=0, keepdims=True)
            drz = jnp.sum(w1z * dh_pre, axis=0, keepdims=True)

            # chain rule through rec = spin^T @ new - trans  =>  grad_new = spin @ grad_rec
            gx, gy, gz = spin_apply(drx, dry, drz)
            gz = jnp.zeros_like(gz)                                # grad[:, :, 2] = 0
            gnorm = jnp.sqrt(jnp.sum(gx * gx + gy * gy + gz * gz))
            scale = coef / (gnorm + 1e-9)
            sx, sy, sz = sx - scale * gx, sy - scale * gy, sz - scale * gz

            # back to the original coordinate frame
            qx, qy, qz = spin_t_apply(sx, sy, sz)
            qx, qy, qz = qx - tx, qy - ty, qz - tz

            # clip per-point displacement to `eps` (repo ClipPointsLinf semantics:
            # per-point L2 norm of the displacement scaled down to the budget).
            dx, dy, dz = qx - ox0, qy - oy0, qz - oz0
            dist = jnp.sqrt(dx * dx + dy * dy + dz * dz)
            cl = jnp.minimum(eps / (dist + 1e-9), 1.0)
            pts_scr[0:1, :] = ox0 + dx * cl
            pts_scr[1:2, :] = oy0 + dy * cl
            pts_scr[2:3, :] = oz0 + dz * cl
            # TODO(synk): get_normal_vector() re-estimates surface normals with an
            # external kNN/PCA routine; the previous unit normals are reused here.

        # ---- forward-only epilogue: final logits + adversarial points ----
        p = pts_scr[...]
        _, _, _, logits = mlp_forward(p[0:1, :], p[1:2, :], p[2:3, :])
        logits_ref[0] = logits
        adv_ref[0] = p

    return kernel


# ----------------------------------------------------------------------------
# Attack driver (mirrors siadv_attack.forward).
# ----------------------------------------------------------------------------
def siadv_attack_forward(points_bn6, target, params, *, eps, step_size,
                         max_steps, num_class):
    w1, b1, w2, b2 = params                      # [3,H], [H], [H,C], [C]
    B, N, _ = points_bn6.shape
    H = w1.shape[1]
    C = w2.shape[1]

    normal = points_bn6[..., 3:6]
    normal = normal / jnp.sqrt(jnp.sum(normal ** 2, axis=-1, keepdims=True))
    pts = points_bn6[..., :3]

    # channel-first [B, 3, N] so N rides the 128-lane axis inside the kernel.
    pts_cf = jnp.transpose(pts, (0, 2, 1)).astype(jnp.float32)
    nrm_cf = jnp.transpose(normal, (0, 2, 1)).astype(jnp.float32)
    onehot = jax.nn.one_hot(target, num_class, dtype=jnp.float32).reshape(B, 1, C)
    # NOTE: the reference hardcodes np.sqrt(3 * 1024) irrespective of N.
    coef = float(step_size) * math.sqrt(3 * 1024)

    kernel = _make_siadv_kernel(N=N, H=H, C=C, max_steps=max_steps,
                                coef=coef, eps=float(eps))

    adv_cf, logits3 = pl.pallas_call(
        kernel,
        out_shape=(jax.ShapeDtypeStruct((B, 3, N), jnp.float32),
                   jax.ShapeDtypeStruct((B, 1, C), jnp.float32)),
        grid_spec=pltpu.PrefetchScalarGridSpec(
            num_scalar_prefetch=0,
            grid=(B,),
            in_specs=[
                pl.BlockSpec((1, 3, N), lambda b: (b, 0, 0)),   # points (xyz)
                pl.BlockSpec((1, 3, N), lambda b: (b, 0, 0)),   # unit normals
                pl.BlockSpec((1, 1, C), lambda b: (b, 0, 0)),   # one-hot target
                pl.BlockSpec((H, 3), lambda b: (0, 0)),         # W1^T
                pl.BlockSpec((H, 1), lambda b: (0, 0)),         # b1
                pl.BlockSpec((H, C), lambda b: (0, 0)),         # W2
                pl.BlockSpec((1, C), lambda b: (0, 0)),         # b2
            ],
            out_specs=[
                pl.BlockSpec((1, 3, N), lambda b: (b, 0, 0)),   # adv points
                pl.BlockSpec((1, 1, C), lambda b: (b, 0, 0)),   # adv logits
            ],
            scratch_shapes=[pltpu.VMEM((3, N), jnp.float32)],   # resident points
        ),
        compiler_params=pltpu.CompilerParams(
            dimension_semantics=("parallel",)),                 # v7x megacore
    )(pts_cf, nrm_cf, onehot,
      jnp.transpose(w1, (1, 0)).astype(jnp.float32),
      b1.reshape(H, 1).astype(jnp.float32),
      w2.astype(jnp.float32),
      b2.reshape(1, C).astype(jnp.float32))

    adv_points = jnp.transpose(adv_cf, (0, 2, 1))               # back to [B, N, 3]
    adv_logits = logits3.reshape(B, C)
    adv_target = jnp.argmax(adv_logits, axis=1)
    num_flipped = jnp.sum(adv_target != target)
    # top5_attack == False path.
    return adv_points, adv_target, num_flipped


if __name__ == "__main__":
    B, N, H, C = 2, 128, 32, 8
    key = jax.random.PRNGKey(0)
    k1, k2, k3, k4, k5, k6, k7 = jax.random.split(key, 7)

    xyz = jax.random.normal(k1, (B, N, 3), jnp.float32)
    nrm = jax.random.normal(k2, (B, N, 3), jnp.float32)
    points = jnp.concatenate([xyz, nrm], axis=-1)               # [B, N, 6]
    target = jax.random.randint(k3, (B,), 0, C)

    w1 = 0.1 * jax.random.normal(k4, (3, H), jnp.float32)
    b1 = 0.01 * jax.random.normal(k5, (H,), jnp.float32)
    w2 = 0.1 * jax.random.normal(k6, (H, C), jnp.float32)
    b2 = 0.01 * jax.random.normal(k7, (C,), jnp.float32)

    attack = jax.jit(functools.partial(
        siadv_attack_forward, eps=0.16, step_size=0.007,
        max_steps=4, num_class=C))
    adv_points, adv_target, n_flipped = attack(points, target, (w1, b1, w2, b2))
    jax.block_until_ready((adv_points, adv_target, n_flipped))
    print("KERNEL_OK")
</pallas_src>

<mosaic_0001>
module attributes {stable_mosaic.version = 11 : i64} {
  func.func @kernel(%arg0: i32, %arg1: memref<1x3x128xf32, #tpu.memory_space<vmem>>, %arg2: memref<1x3x128xf32, #tpu.memory_space<vmem>>, %arg3: memref<1x1x8xf32, #tpu.memory_space<vmem>>, %arg4: memref<32x3xf32, #tpu.memory_space<vmem>>, %arg5: memref<32x1xf32, #tpu.memory_space<vmem>>, %arg6: memref<32x8xf32, #tpu.memory_space<vmem>>, %arg7: memref<1x8xf32, #tpu.memory_space<vmem>>, %arg8: memref<1x3x128xf32, #tpu.memory_space<vmem>>, %arg9: memref<1x1x8xf32, #tpu.memory_space<vmem>>, %arg10: memref<3x128xf32, #tpu.memory_space<vmem>>) attributes {dimension_semantics = [#tpu.dimension_semantics<parallel>], iteration_bounds = array<i64: 2>, scalar_prefetch = 0 : i64, scratch_operands = 1 : i64, tpu.core_type = #tpu.core_type<tc>, window_params = [{transform_indices = @transform_0, window_bounds = array<i64: 1, 3, 128>}, {transform_indices = @transform_1, window_bounds = array<i64: 1, 3, 128>}, {transform_indices = @transform_2, window_bounds = array<i64: 1, 1, 8>}, {pipeline_mode = #tpu.pipeline_mode<synchronous>, transform_indices = @transform_3, window_bounds = array<i64: 32, 3>}, {pipeline_mode = #tpu.pipeline_mode<synchronous>, transform_indices = @transform_4, window_bounds = array<i64: 32, 1>}, {pipeline_mode = #tpu.pipeline_mode<synchronous>, transform_indices = @transform_5, window_bounds = array<i64: 32, 8>}, {pipeline_mode = #tpu.pipeline_mode<synchronous>, transform_indices = @transform_6, window_bounds = array<i64: 1, 8>}, {transform_indices = @transform_7, window_bounds = array<i64: 1, 3, 128>}, {transform_indices = @transform_8, window_bounds = array<i64: 1, 1, 8>}]} {
    %c0 = arith.constant 0 : index
    %c0_0 = arith.constant 0 : index
    %c0_1 = arith.constant 0 : index
    %0 = vector.load %arg2[%c0, %c0_0, %c0_1] : memref<1x3x128xf32, #tpu.memory_space<vmem>>, vector<1x3x128xf32>
    %1 = vector.shape_cast %0 : vector<1x3x128xf32> to vector<3x128xf32>
    %2 = vector.extract_strided_slice %1 {offsets = [0, 0], sizes = [1, 128], strides = [1, 1]} : vector<3x128xf32> to vector<1x128xf32>
    %3 = vector.extract_strided_slice %1 {offsets = [1, 0], sizes = [1, 128], strides = [1, 1]} : vector<3x128xf32> to vector<1x128xf32>
    %4 = vector.extract_strided_slice %1 {offsets = [2, 0], sizes = [1, 128], strides = [1, 1]} : vector<3x128xf32> to vector<1x128xf32>
    %c0_2 = arith.constant 0 : index
    %c0_3 = arith.constant 0 : index
    %c0_4 = arith.constant 0 : index
    %5 = vector.load %arg1[%c0_2, %c0_3, %c0_4] : memref<1x3x128xf32, #tpu.memory_space<vmem>>, vector<1x3x128xf32>
    %6 = vector.shape_cast %5 : vector<1x3x128xf32> to vector<3x128xf32>
    %7 = vector.extract_strided_slice %6 {offsets = [0, 0], sizes = [1, 128], strides = [1, 1]} : vector<3x128xf32> to vector<1x128xf32>
    %8 = vector.extract_strided_slice %6 {offsets = [1, 0], sizes = [1, 128], strides = [1, 1]} : vector<3x128xf32> to vector<1x128xf32>
    %9 = vector.extract_strided_slice %6 {offsets = [2, 0], sizes = [1, 128], strides = [1, 1]} : vector<3x128xf32> to vector<1x128xf32>
    %c0_5 = arith.constant 0 : index
    %c0_6 = arith.constant 0 : index
    %c0_7 = arith.constant 0 : index
    %10 = vector.load %arg3[%c0_5, %c0_6, %c0_7] : memref<1x1x8xf32, #tpu.memory_space<vmem>>, vector<1x1x8xf32>
    %11 = vector.shape_cast %10 : vector<1x1x8xf32> to vector<1x8xf32>
    %c0_8 = arith.constant 0 : index
    %c0_9 = arith.constant 0 : index
    %12 = vector.load %arg4[%c0_8, %c0_9] : memref<32x3xf32, #tpu.memory_space<vmem>>, vector<32x3xf32>
    %c0_10 = arith.constant 0 : index
    %c0_11 = arith.constant 0 : index
    %13 = vector.load %arg5[%c0_10, %c0_11] : memref<32x1xf32, #tpu.memory_space<vmem>>, vector<32x1xf32>
    %c0_12 = arith.constant 0 : index
    %c0_13 = arith.constant 0 : index
    %14 = vector.load %arg6[%c0_12, %c0_13] : memref<32x8xf32, #tpu.memory_space<vmem>>, vector<32x8xf32>
    %c0_14 = arith.constant 0 : index
    %c0_15 = arith.constant 0 : index
    %15 = vector.load %arg7[%c0_14, %c0_15] : memref<1x8xf32, #tpu.memory_space<vmem>>, vector<1x8xf32>
    %16 = vector.extract_strided_slice %12 {offsets = [0, 0], sizes = [32, 1], strides = [1, 1]} : vector<32x3xf32> to vector<32x1xf32>
    %17 = vector.extract_strided_slice %12 {offsets = [0, 1], sizes = [32, 1], strides = [1, 1]} : vector<32x3xf32> to vector<32x1xf32>
    %18 = vector.extract_strided_slice %12 {offsets = [0, 2], sizes = [32, 1], strides = [1, 1]} : vector<32x3xf32> to vector<32x1xf32>
    %19 = arith.mulf %4, %4 : vector<1x128xf32>
    %cst = arith.constant 1.000000e+00 : f32
    %20 = vector.broadcast %cst : f32 to vector<1x128xf32>
    %21 = arith.subf %20, %19 : vector<1x128xf32>
    %cst_16 = arith.constant 0.000000e+00 : f32
    %22 = vector.broadcast %cst_16 : f32 to vector<1x128xf32>
    %23 = arith.maximumf %21, %22 : vector<1x128xf32>
    %cst_17 = arith.constant 1.000000e-10 : f32
    %24 = vector.broadcast %cst_17 : f32 to vector<1x128xf32>
    %25 = arith.addf %23, %24 : vector<1x128xf32>
    %26 = math.sqrt %25 : vector<1x128xf32>
    %27 = arith.divf %3, %26 : vector<1x128xf32>
    %cst_18 = arith.constant 0.000000e+00 : f32
    %28 = vector.broadcast %cst_18 : f32 to vector<1x128xf32>
    %29 = arith.subf %28, %2 : vector<1x128xf32>
    %30 = arith.divf %29, %26 : vector<1x128xf32>
    %31 = arith.mulf %27, %27 : vector<1x128xf32>
    %32 = arith.mulf %27, %27 : vector<1x128xf32>
    %cst_19 = arith.constant 1.000000e+00 : f32
    %33 = vector.broadcast %cst_19 : f32 to vector<1x128xf32>
    %34 = arith.subf %33, %32 : vector<1x128xf32>
    %35 = arith.mulf %34, %4 : vector<1x128xf32>
    %36 = arith.addf %31, %35 : vector<1x128xf32>
    %37 = arith.mulf %27, %30 : vector<1x128xf32>
    %cst_20 = arith.constant 1.000000e+00 : f32
    %38 = vector.broadcast %cst_20 : f32 to vector<1x128xf32>
    %39 = arith.subf %38, %4 : vector<1x128xf32>
    %40 = arith.mulf %37, %39 : vector<1x128xf32>
    %41 = arith.mulf %30, %26 : vector<1x128xf32>
    %42 = arith.mulf %30, %30 : vector<1x128xf32>
    %43 = arith.mulf %30, %30 : vector<1x128xf32>
    %cst_21 = arith.constant 1.000000e+00 : f32
    %44 = vector.broadcast %cst_21 : f32 to vector<1x128xf32>
    %45 = arith.subf %44, %43 : vector<1x128xf32>
    %46 = arith.mulf %45, %4 : vector<1x128xf32>
    %47 = arith.addf %42, %46 : vector<1x128xf32>
    %cst_22 = arith.constant 0.000000e+00 : f32
    %48 = vector.broadcast %cst_22 : f32 to vector<1x128xf32>
    %49 = arith.subf %48, %27 : vector<1x128xf32>
    %50 = arith.mulf %49, %26 : vector<1x128xf32>
    %c0_23 = arith.constant 0 : index
    %c0_24 = arith.constant 0 : index
    %51 = vector.load %arg10[%c0_23, %c0_24] : memref<3x128xf32, #tpu.memory_space<vmem>>, vector<3x128xf32>
    tpu.vector_store %arg10[%c0_23, %c0_24], %6 {strides = array<i32>} : memref<3x128xf32, #tpu.memory_space<vmem>>, vector<3x128xf32>,
    %c0_i32 = arith.constant 0 : i32
    %c4_i32 = arith.constant 4 : i32
    %52 = arith.addi %c0_i32, %c4_i32 : i32
    %c1_i32 = arith.constant 1 : i32
    scf.for %arg11 = %c0_i32 to %52 step %c1_i32  : i32 {
      %c0_36 = arith.constant 0 : index
      %c0_37 = arith.constant 0 : index
      %85 = vector.load %arg10[%c0_36, %c0_37] : memref<3x128xf32, #tpu.memory_space<vmem>>, vector<3x128xf32>
      %86 = vector.extract_strided_slice %85 {offsets = [0, 0], sizes = [1, 128], strides = [1, 1]} : vector<3x128xf32> to vector<1x128xf32>
      %87 = vector.extract_strided_slice %85 {offsets = [1, 0], sizes = [1, 128], strides = [1, 1]} : vector<3x128xf32> to vector<1x128xf32>
      %88 = vector.extract_strided_slice %85 {offsets = [2, 0], sizes = [1, 128], strides = [1, 1]} : vector<3x128xf32> to vector<1x128xf32>
      %89 = arith.mulf %86, %2 : vector<1x128xf32>
      %90 = arith.mulf %87, %3 : vector<1x128xf32>
      %91 = arith.addf %89, %90 : vector<1x128xf32>
      %92 = arith.mulf %88, %4 : vector<1x128xf32>
      %93 = arith.addf %91, %92 : vector<1x128xf32>
      %94 = arith.mulf %93, %2 : vector<1x128xf32>
      %95 = arith.mulf %93, %3 : vector<1x128xf32>
      %96 = arith.mulf %93, %4 : vector<1x128xf32>
      %97 = arith.addf %86, %94 : vector<1x128xf32>
      %98 = arith.addf %87, %95 : vector<1x128xf32>
      %99 = arith.addf %88, %96 : vector<1x128xf32>
      %100 = arith.mulf %36, %97 : vector<1x128xf32>
      %101 = arith.mulf %40, %98 : vector<1x128xf32>
      %102 = arith.addf %100, %101 : vector<1x128xf32>
      %103 = arith.mulf %41, %99 : vector<1x128xf32>
      %104 = arith.addf %102, %103 : vector<1x128xf32>
      %105 = arith.mulf %40, %97 : vector<1x128xf32>
      %106 = arith.mulf %47, %98 : vector<1x128xf32>
      %107 = arith.addf %105, %106 : vector<1x128xf32>
      %108 = arith.mulf %50, %99 : vector<1x128xf32>
      %109 = arith.addf %107, %108 : vector<1x128xf32>
      %cst_38 = arith.constant 0.000000e+00 : f32
      %110 = vector.broadcast %cst_38 : f32 to vector<1x128xf32>
      %111 = arith.subf %110, %41 : vector<1x128xf32>
      %112 = arith.mulf %111, %97 : vector<1x128xf32>
      %113 = arith.mulf %50, %98 : vector<1x128xf32>
      %114 = arith.subf %112, %113 : vector<1x128xf32>
      %115 = arith.mulf %4, %99 : vector<1x128xf32>
      %116 = arith.addf %114, %115 : vector<1x128xf32>
      %117 = arith.mulf %36, %104 : vector<1x128xf32>
      %118 = arith.mulf %40, %109 : vector<1x128xf32>
      %119 = arith.addf %117, %118 : vector<1x128xf32>
      %120 = arith.mulf %41, %116 : vector<1x128xf32>
      %121 = arith.subf %119, %120 : vector<1x128xf32>
      %122 = arith.mulf %40, %104 : vector<1x128xf32>
      %123 = arith.mulf %47, %109 : vector<1x128xf32>
      %124 = arith.addf %122, %123 : vector<1x128xf32>
      %125 = arith.mulf %50, %116 : vector<1x128xf32>
      %126 = arith.subf %124, %125 : vector<1x128xf32>
      %127 = arith.mulf %41, %104 : vector<1x128xf32>
      %128 = arith.mulf %50, %109 : vector<1x128xf32>
      %129 = arith.addf %127, %128 : vector<1x128xf32>
      %130 = arith.mulf %4, %116 : vector<1x128xf32>
      %131 = arith.addf %129, %130 : vector<1x128xf32>
      %132 = arith.subf %121, %94 : vector<1x128xf32>
      %133 = arith.subf %126, %95 : vector<1x128xf32>
      %134 = arith.subf %131, %96 : vector<1x128xf32>
      %135 = vector.broadcast %16 : vector<32x1xf32> to vector<32x128xf32>
      %136 = vector.broadcast %132 : vector<1x128xf32> to vector<32x128xf32>
      %137 = arith.mulf %135, %136 : vector<32x128xf32>
      %138 = vector.broadcast %17 : vector<32x1xf32> to vector<32x128xf32>
      %139 = vector.broadcast %133 : vector<1x128xf32> to vector<32x128xf32>
      %140 = arith.mulf %138, %139 : vector<32x128xf32>
      %141 = arith.addf %137, %140 : vector<32x128xf32>
      %142 = vector.broadcast %18 : vector<32x1xf32> to vector<32x128xf32>
      %143 = vector.broadcast %134 : vector<1x128xf32> to vector<32x128xf32>
      %144 = arith.mulf %142, %143 : vector<32x128xf32>
      %145 = arith.addf %141, %144 : vector<32x128xf32>
      %146 = vector.broadcast %13 : vector<32x1xf32> to vector<32x128xf32>
      %147 = arith.addf %145, %146 : vector<32x128xf32>
      %cst_39 = arith.constant 0.000000e+00 : f32
      %148 = vector.broadcast %cst_39 : f32 to vector<32x128xf32>
      %149 = arith.maximumf %147, %148 : vector<32x128xf32>
      %cst_40 = arith.constant dense<0xFF800000> : vector<32xf32>
      %150 = vector.multi_reduction <maximumf>, %149, %cst_40 [1] : vector<32x128xf32> to vector<32xf32>
      %151 = vector.shape_cast %150 : vector<32xf32> to vector<32x1xf32>
      %152 = vector.broadcast %151 : vector<32x1xf32> to vector<32x8xf32>
      %153 = arith.mulf %152, %14 : vector<32x8xf32>
      %cst_41 = arith.constant dense<0.000000e+00> : vector<8xf32>
      %154 = vector.multi_reduction <add>, %153, %cst_41 [0] : vector<32x8xf32> to vector<8xf32>
      %155 = vector.shape_cast %154 : vector<8xf32> to vector<1x8xf32>
      %156 = arith.addf %155, %15 : vector<1x8xf32>
      %157 = arith.mulf %11, %156 : vector<1x8xf32>
      %158 = vector.shape_cast %157 : vector<1x8xf32> to vector<1x1x8xf32>
      %cst_42 = arith.constant dense<0.000000e+00> : vector<1xf32>
      %159 = vector.multi_reduction <add>, %158, %cst_42 [1, 2] : vector<1x1x8xf32> to vector<1xf32>
      %160 = vector.shape_cast %159 : vector<1xf32> to vector<1x1x1xf32>
      %161 = vector.extract %160[0, 0, 0] : f32 from vector<1x1x1xf32>
      %cst_43 = arith.constant 1.000000e+00 : f32
      %162 = vector.broadcast %cst_43 : f32 to vector<1x8xf32>
      %163 = arith.subf %162, %11 : vector<1x8xf32>
      %164 = arith.mulf %163, %156 : vector<1x8xf32>
      %cst_44 = arith.constant 1.000000e+04 : f32
      %165 = vector.broadcast %cst_44 : f32 to vector<1x8xf32>
      %166 = arith.mulf %11, %165 : vector<1x8xf32>
      %167 = arith.subf %164, %166 : vector<1x8xf32>
      %168 = vector.shape_cast %167 : vector<1x8xf32> to vector<1x1x8xf32>
      %cst_45 = arith.constant dense<0xFF800000> : vector<1xf32>
      %169 = vector.multi_reduction <maximumf>, %168, %cst_45 [1, 2] : vector<1x1x8xf32> to vector<1xf32>
      %170 = vector.shape_cast %169 : vector<1xf32> to vector<1x1x1xf32>
      %171 = vector.extract %170[0, 0, 0] : f32 from vector<1x1x1xf32>
      %172 = tpu.iota {dimensions = array<i32: 1>} : vector<1x8xi32>
      %173 = vector.broadcast %171 : f32 to vector<1x8xf32>
      %174 = arith.cmpf oeq, %167, %173 : vector<1x8xf32>
      %c8_i32 = arith.constant 8 : i32
      %175 = vector.broadcast %c8_i32 : i32 to vector<1x8xi32>
      %176 = arith.select %174, %172, %175 : vector<1x8xi1>, vector<1x8xi32>
      %177 = vector.shape_cast %176 : vector<1x8xi32> to vector<1x1x8xi32>
      %cst_46 = arith.constant dense<2147483647> : vector<1xi32>
      %178 = vector.multi_reduction <minsi>, %177, %cst_46 [1, 2] : vector<1x1x8xi32> to vector<1xi32>
      %179 = vector.shape_cast %178 : vector<1xi32> to vector<1x1x1xi32>
      %180 = vector.extract %179[0, 0, 0] : i32 from vector<1x1x1xi32>
      %181 = vector.broadcast %180 : i32 to vector<1x8xi32>
      %182 = arith.cmpi eq, %172, %181 : vector<1x8xi32>
      %183 = arith.extui %182 : vector<1x8xi1> to vector<1x8xi32>
      %184 = arith.sitofp %183 : vector<1x8xi32> to vector<1x8xf32>
      %185 = arith.subf %161, %171 : f32
      %cst_47 = arith.constant 0.000000e+00 : f32
      %186 = arith.cmpf ogt, %185, %cst_47 : f32
      %cst_48 = arith.constant 1.000000e+00 : f32
      %cst_49 = arith.constant 0.000000e+00 : f32
      %187 = arith.select %186, %cst_48, %cst_49 : f32
      %188 = arith.subf %11, %184 : vector<1x8xf32>
      %189 = vector.broadcast %187 : f32 to vector<1x8xf32>
      %190 = arith.mulf %189, %188 : vector<1x8xf32>
      %191 = vector.broadcast %190 : vector<1x8xf32> to vector<32x8xf32>
      %192 = arith.mulf %14, %191 : vector<32x8xf32>
      %cst_50 = arith.constant dense<0.000000e+00> : vector<32xf32>
      %193 = vector.multi_reduction <add>, %192, %cst_50 [1] : vector<32x8xf32> to vector<32xf32>
      %194 = vector.shape_cast %193 : vector<32xf32> to vector<32x1xf32>
      %195 = tpu.iota {dimensions = array<i32: 1>} : vector<32x128xi32>
      %196 = vector.broadcast %151 : vector<32x1xf32> to vector<32x128xf32>
      %197 = arith.cmpf oeq, %149, %196 : vector<32x128xf32>
      %c128_i32 = arith.constant 128 : i32
      %198 = vector.broadcast %c128_i32 : i32 to vector<32x128xi32>
      %199 = arith.select %197, %195, %198 : vector<32x128xi1>, vector<32x128xi32>
      %cst_51 = arith.constant dense<2147483647> : vector<32xi32>
      %200 = vector.multi_reduction <minsi>, %199, %cst_51 [1] : vector<32x128xi32> to vector<32xi32>
      %201 = vector.shape_cast %200 : vector<32xi32> to vector<32x1xi32>
      %202 = vector.broadcast %201 : vector<32x1xi32> to vector<32x128xi32>
      %203 = arith.cmpi eq, %195, %202 : vector<32x128xi32>
      %204 = arith.extui %203 : vector<32x128xi1> to vector<32x128xi32>
      %205 = arith.sitofp %204 : vector<32x128xi32> to vector<32x128xf32>
      %206 = vector.broadcast %194 : vector<32x1xf32> to vector<32x128xf32>
      %207 = arith.mulf %205, %206 : vector<32x128xf32>
      %cst_52 = arith.constant 0.000000e+00 : f32
      %208 = vector.broadcast %cst_52 : f32 to vector<32x128xf32>
      %209 = arith.cmpf ogt, %147, %208 : vector<32x128xf32>
      %210 = arith.extui %209 : vector<32x128xi1> to vector<32x128xi32>
      %211 = arith.sitofp %210 : vector<32x128xi32> to vector<32x128xf32>
      %212 = arith.mulf %207, %211 : vector<32x128xf32>
      %213 = vector.broadcast %16 : vector<32x1xf32> to vector<32x128xf32>
      %214 = arith.mulf %213, %212 : vector<32x128xf32>
      %cst_53 = arith.constant dense<0.000000e+00> : vector<128xf32>
      %215 = vector.multi_reduction <add>, %214, %cst_53 [0] : vector<32x128xf32> to vector<128xf32>
      %216 = vector.shape_cast %215 : vector<128xf32> to vector<1x128xf32>
      %217 = vector.broadcast %17 : vector<32x1xf32> to vector<32x128xf32>
      %218 = arith.mulf %217, %212 : vector<32x128xf32>
      %cst_54 = arith.constant dense<0.000000e+00> : vector<128xf32>
      %219 = vector.multi_reduction <add>, %218, %cst_54 [0] : vector<32x128xf32> to vector<128xf32>
      %220 = vector.shape_cast %219 : vector<128xf32> to vector<1x128xf32>
      %221 = vector.broadcast %18 : vector<32x1xf32> to vector<32x128xf32>
      %222 = arith.mulf %221, %212 : vector<32x128xf32>
      %cst_55 = arith.constant dense<0.000000e+00> : vector<128xf32>
      %223 = vector.multi_reduction <add>, %222, %cst_55 [0] : vector<32x128xf32> to vector<128xf32>
      %224 = vector.shape_cast %223 : vector<128xf32> to vector<1x128xf32>
      %225 = arith.mulf %36, %216 : vector<1x128xf32>
      %226 = arith.mulf %40, %220 : vector<1x128xf32>
      %227 = arith.addf %225, %226 : vector<1x128xf32>
      %228 = arith.mulf %41, %224 : vector<1x128xf32>
      %229 = arith.addf %227, %228 : vector<1x128xf32>
      %230 = arith.mulf %40, %216 : vector<1x128xf32>
      %231 = arith.mulf %47, %220 : vector<1x128xf32>
      %232 = arith.addf %230, %231 : vector<1x128xf32>
      %233 = arith.mulf %50, %224 : vector<1x128xf32>
      %234 = arith.addf %232, %233 : vector<1x128xf32>
      %cst_56 = arith.constant 0.000000e+00 : f32
      %235 = vector.broadcast %cst_56 : f32 to vector<1x128xf32>
      %236 = arith.mulf %229, %229 : vector<1x128xf32>
      %237 = arith.mulf %234, %234 : vector<1x128xf32>
      %238 = arith.addf %236, %237 : vector<1x128xf32>
      %239 = arith.mulf %235, %235 : vector<1x128xf32>
      %240 = arith.addf %238, %239 : vector<1x128xf32>
      %241 = vector.shape_cast %240 : vector<1x128xf32> to vector<1x1x128xf32>
      %cst_57 = arith.constant dense<0.000000e+00> : vector<1xf32>
      %242 = vector.multi_reduction <add>, %241, %cst_57 [1, 2] : vector<1x1x128xf32> to vector<1xf32>
      %243 = vector.shape_cast %242 : vector<1xf32> to vector<1x1x1xf32>
      %244 = vector.extract %243[0, 0, 0] : f32 from vector<1x1x1xf32>
      %245 = math.sqrt %244 : f32
      %cst_58 = arith.constant 9.99999971E-10 : f32
      %246 = arith.addf %245, %cst_58 : f32
      %cst_59 = arith.constant 0.387979388 : f32
      %247 = arith.divf %cst_59, %246 : f32
      %248 = vector.broadcast %247 : f32 to vector<1x128xf32>
      %249 = arith.mulf %248, %229 : vector<1x128xf32>
      %250 = arith.subf %104, %249 : vector<1x128xf32>
      %251 = vector.broadcast %247 : f32 to vector<1x128xf32>
      %252 = arith.mulf %251, %234 : vector<1x128xf32>
      %253 = arith.subf %109, %252 : vector<1x128xf32>
      %254 = vector.broadcast %247 : f32 to vector<1x128xf32>
      %255 = arith.mulf %254, %235 : vector<1x128xf32>
      %256 = arith.subf %116, %255 : vector<1x128xf32>
      %257 = arith.mulf %36, %250 : vector<1x128xf32>
      %258 = arith.mulf %40, %253 : vector<1x128xf32>
      %259 = arith.addf %257, %258 : vector<1x128xf32>
      %260 = arith.mulf %41, %256 : vector<1x128xf32>
      %261 = arith.subf %259, %260 : vector<1x128xf32>
      %262 = arith.mulf %40, %250 : vector<1x128xf32>
      %263 = arith.mulf %47, %253 : vector<1x128xf32>
      %264 = arith.addf %262, %263 : vector<1x128xf32>
      %265 = arith.mulf %50, %256 : vector<1x128xf32>
      %266 = arith.subf %264, %265 : vector<1x128xf32>
      %267 = arith.mulf %41, %250 : vector<1x128xf32>
      %268 = arith.mulf %50, %253 : vector<1x128xf32>
      %269 = arith.addf %267, %268 : vector<1x128xf32>
      %270 = arith.mulf %4, %256 : vector<1x128xf32>
      %271 = arith.addf %269, %270 : vector<1x128xf32>
      %272 = arith.subf %261, %94 : vector<1x128xf32>
      %273 = arith.subf %266, %95 : vector<1x128xf32>
      %274 = arith.subf %271, %96 : vector<1x128xf32>
      %275 = arith.subf %272, %7 : vector<1x128xf32>
      %276 = arith.subf %273, %8 : vector<1x128xf32>
      %277 = arith.subf %274, %9 : vector<1x128xf32>
      %278 = arith.mulf %275, %275 : vector<1x128xf32>
      %279 = arith.mulf %276, %276 : vector<1x128xf32>
      %280 = arith.addf %278, %279 : vector<1x128xf32>
      %281 = arith.mulf %277, %277 : vector<1x128xf32>
      %282 = arith.addf %280, %281 : vector<1x128xf32>
      %283 = math.sqrt %282 : vector<1x128xf32>
      %cst_60 = arith.constant 9.99999971E-10 : f32
      %284 = vector.broadcast %cst_60 : f32 to vector<1x128xf32>
      %285 = arith.addf %283, %284 : vector<1x128xf32>
      %cst_61 = arith.constant 1.600000e-01 : f32
      %286 = vector.broadcast %cst_61 : f32 to vector<1x128xf32>
      %287 = arith.divf %286, %285 : vector<1x128xf32>
      %cst_62 = arith.constant 1.000000e+00 : f32
      %288 = vector.broadcast %cst_62 : f32 to vector<1x128xf32>
      %289 = arith.minimumf %287, %288 : vector<1x128xf32>
      %290 = arith.mulf %275, %289 : vector<1x128xf32>
      %291 = arith.addf %7, %290 : vector<1x128xf32>
      %c0_63 = arith.constant 0 : index
      %c0_64 = arith.constant 0 : index
      %292 = vector.load %arg10[%c0_63, %c0_64] : memref<3x128xf32, #tpu.memory_space<vmem>>, vector<1x128xf32>
      tpu.vector_store %arg10[%c0_63, %c0_64], %291 {strides = array<i32>} : memref<3x128xf32, #tpu.memory_space<vmem>>, vector<1x128xf32>,
      %293 = arith.mulf %276, %289 : vector<1x128xf32>
      %294 = arith.addf %8, %293 : vector<1x128xf32>
      %c1 = arith.constant 1 : index
      %c0_65 = arith.constant 0 : index
      %295 = vector.load %arg10[%c1, %c0_65] : memref<3x128xf32, #tpu.memory_space<vmem>>, vector<1x128xf32>
      tpu.vector_store %arg10[%c1, %c0_65], %294 {strides = array<i32>} : memref<3x128xf32, #tpu.memory_space<vmem>>, vector<1x128xf32>,
      %296 = arith.mulf %277, %289 : vector<1x128xf32>
      %297 = arith.addf %9, %296 : vector<1x128xf32>
      %c2 = arith.constant 2 : index
      %c0_66 = arith.constant 0 : index
      %298 = vector.load %arg10[%c2, %c0_66] : memref<3x128xf32, #tpu.memory_space<vmem>>, vector<1x128xf32>
      tpu.vector_store %arg10[%c2, %c0_66], %297 {strides = array<i32>} : memref<3x128xf32, #tpu.memory_space<vmem>>, vector<1x128xf32>,
    }
    %c0_25 = arith.constant 0 : index
    %c0_26 = arith.constant 0 : index
    %53 = vector.load %arg10[%c0_25, %c0_26] : memref<3x128xf32, #tpu.memory_space<vmem>>, vector<3x128xf32>
    %54 = vector.extract_strided_slice %53 {offsets = [0, 0], sizes = [1, 128], strides = [1, 1]} : vector<3x128xf32> to vector<1x128xf32>
    %55 = vector.extract_strided_slice %53 {offsets = [1, 0], sizes = [1, 128], strides = [1, 1]} : vector<3x128xf32> to vector<1x128xf32>
    %56 = vector.extract_strided_slice %53 {offsets = [2, 0], sizes = [1, 128], strides = [1, 1]} : vector<3x128xf32> to vector<1x128xf32>
    %57 = vector.broadcast %16 : vector<32x1xf32> to vector<32x128xf32>
    %58 = vector.broadcast %54 : vector<1x128xf32> to vector<32x128xf32>
    %59 = arith.mulf %57, %58 : vector<32x128xf32>
    %60 = vector.broadcast %17 : vector<32x1xf32> to vector<32x128xf32>
    %61 = vector.broadcast %55 : vector<1x128xf32> to vector<32x128xf32>
    %62 = arith.mulf %60, %61 : vector<32x128xf32>
    %63 = arith.addf %59, %62 : vector<32x128xf32>
    %64 = vector.broadcast %18 : vector<32x1xf32> to vector<32x128xf32>
    %65 = vector.broadcast %56 : vector<1x128xf32> to vector<32x128xf32>
    %66 = arith.mulf %64, %65 : vector<32x128xf32>
    %67 = arith.addf %63, %66 : vector<32x128xf32>
    %68 = vector.broadcast %13 : vector<32x1xf32> to vector<32x128xf32>
    %69 = arith.addf %67, %68 : vector<32x128xf32>
    %cst_27 = arith.constant 0.000000e+00 : f32
    %70 = vector.broadcast %cst_27 : f32 to vector<32x128xf32>
    %71 = arith.maximumf %69, %70 : vector<32x128xf32>
    %cst_28 = arith.constant dense<0xFF800000> : vector<32xf32>
    %72 = vector.multi_reduction <maximumf>, %71, %cst_28 [1] : vector<32x128xf32> to vector<32xf32>
    %73 = vector.shape_cast %72 : vector<32xf32> to vector<32x1xf32>
    %74 = vector.broadcast %73 : vector<32x1xf32> to vector<32x8xf32>
    %75 = arith.mulf %74, %14 : vector<32x8xf32>
    %cst_29 = arith.constant dense<0.000000e+00> : vector<8xf32>
    %76 = vector.multi_reduction <add>, %75, %cst_29 [0] : vector<32x8xf32> to vector<8xf32>
    %77 = vector.shape_cast %76 : vector<8xf32> to vector<1x8xf32>
    %78 = arith.addf %77, %15 : vector<1x8xf32>
    %c0_30 = arith.constant 0 : index
    %c0_31 = arith.constant 0 : index
    %c0_32 = arith.constant 0 : index
    %79 = vector.load %arg9[%c0_30, %c0_31, %c0_32] : memref<1x1x8xf32, #tpu.memory_space<vmem>>, vector<1x1x8xf32>
    %80 = vector.shape_cast %79 : vector<1x1x8xf32> to vector<1x8xf32>
    %81 = vector.shape_cast %78 : vector<1x8xf32> to vector<1x1x8xf32>
    tpu.vector_store %arg9[%c0_30, %c0_31, %c0_32], %81 {strides = array<i32>} : memref<1x1x8xf32, #tpu.memory_space<vmem>>, vector<1x1x8xf32>,
    %c0_33 = arith.constant 0 : index
    %c0_34 = arith.constant 0 : index
    %c0_35 = arith.constant 0 : index
    %82 = vector.load %arg8[%c0_33, %c0_34, %c0_35] : memref<1x3x128xf32, #tpu.memory_space<vmem>>, vector<1x3x128xf32>
    %83 = vector.shape_cast %82 : vector<1x3x128xf32> to vector<3x128xf32>
    %84 = vector.shape_cast %53 : vector<3x128xf32> to vector<1x3x128xf32>
    tpu.vector_store %arg8[%c0_33, %c0_34, %c0_35], %84 {strides = array<i32>} : memref<1x3x128xf32, #tpu.memory_space<vmem>>, vector<1x3x128xf32>,
    return
  }
  func.func @transform_0(%arg0: i32) -> (i32, i32, i32) {
    %c0_i32 = arith.constant 0 : i32
    %c0_i32_0 = arith.constant 0 : i32
    %c0_i32_1 = arith.constant 0 : i32
    return %arg0, %c0_i32, %c0_i32_0 : i32, i32, i32
  }
  func.func @transform_1(%arg0: i32) -> (i32, i32, i32) {
    %c0_i32 = arith.constant 0 : i32
    %c0_i32_0 = arith.constant 0 : i32
    %c0_i32_1 = arith.constant 0 : i32
    return %arg0, %c0_i32, %c0_i32_0 : i32, i32, i32
  }
  func.func @transform_2(%arg0: i32) -> (i32, i32, i32) {
    %c0_i32 = arith.constant 0 : i32
    %c0_i32_0 = arith.constant 0 : i32
    %c0_i32_1 = arith.constant 0 : i32
    return %arg0, %c0_i32, %c0_i32_0 : i32, i32, i32
  }
  func.func @transform_3(%arg0: i32) -> (i32, i32) {
    %c0_i32 = arith.constant 0 : i32
    %c0_i32_0 = arith.constant 0 : i32
    %c0_i32_1 = arith.constant 0 : i32
    return %c0_i32, %c0_i32_0 : i32, i32
  }
  func.func @transform_4(%arg0: i32) -> (i32, i32) {
    %c0_i32 = arith.constant 0 : i32
    %c0_i32_0 = arith.constant 0 : i32
    %c0_i32_1 = arith.constant 0 : i32
    return %c0_i32, %c0_i32_0 : i32, i32
  }
  func.func @transform_5(%arg0: i32) -> (i32, i32) {
    %c0_i32 = arith.constant 0 : i32
    %c0_i32_0 = arith.constant 0 : i32
    %c0_i32_1 = arith.constant 0 : i32
    return %c0_i32, %c0_i32_0 : i32, i32
  }
  func.func @transform_6(%arg0: i32) -> (i32, i32) {
    %c0_i32 = arith.constant 0 : i32
    %c0_i32_0 = arith.constant 0 : i32
    %c0_i32_1 = arith.constant 0 : i32
    return %c0_i32, %c0_i32_0 : i32, i32
  }
  func.func @transform_7(%arg0: i32) -> (i32, i32, i32) {
    %c0_i32 = arith.constant 0 : i32
    %c0_i32_0 = arith.constant 0 : i32
    %c0_i32_1 = arith.constant 0 : i32
    return %arg0, %c0_i32, %c0_i32_0 : i32, i32, i32
  }
  func.func @transform_8(%arg0: i32) -> (i32, i32, i32) {
    %c0_i32 = arith.constant 0 : i32
    %c0_i32_0 = arith.constant 0 : i32
    %c0_i32_1 = arith.constant 0 : i32
    return %arg0, %c0_i32, %c0_i32_0 : i32, i32, i32
  }
}

</mosaic_0001>

<llo_original>
// kernel: siadv_attack_forward.1
$region0: #{siadv_attack_forward.1}
  #allocation0 [shape = 'u32[]', space=smem, size = 0x4, offset = 0x4, fixed_abs, tag = 'smem constant byte address 0x4 - core index']
  #allocation1 [shape = 'u32[144,128]{1,0:T(1,128)}', space=vmem, size = 0x12000, scoped, tag = 'internal scratch']
  #allocation2 [shape = 'f32[3,128]{1,0:T(4,128)}', space=vmem, size = 0x800, scoped, tag = 'scratch operand']
  %s0 = inlined_call_operand.vmem [shape: f32[2,3,128], index: 0, kind: input, shape index: {}]
  %s1 = inlined_call_operand.vmem [shape: f32[2,3,128], index: 1, kind: input, shape index: {}]
  %s2 = inlined_call_operand.vmem [shape: f32[2,1,8], index: 2, kind: input, shape index: {}]
  %s3 = inlined_call_operand.vmem [shape: f32[32,3], index: 3, kind: input, shape index: {}]
  %s4 = inlined_call_operand.vmem [shape: f32[32,1], index: 4, kind: input, shape index: {}]
  %s5 = inlined_call_operand.vmem [shape: f32[32,8], index: 5, kind: input, shape index: {}]
  %s6 = inlined_call_operand.vmem [shape: f32[1,8], index: 6, kind: input, shape index: {}]
  %s7 = inlined_call_operand.vmem [shape: f32[2,3,128], index: 7, kind: output, shape index: {0}]
  %s8 = inlined_call_operand.vmem [shape: f32[2,1,8], index: 8, kind: output, shape index: {1}]
  %9 = xla_tuple %s7, %s8
  %s10 = sld [smem:[#allocation0]]
  $region76: #{siadv_attack_forward.1} parent=0
    _
  %s12 = ssub.s32 1, %s10
  %s13 = scalar_select 0, %s12, %s10
  loop: start=0, step=1, limit=4
  $region2: #{siadv_attack_forward.1} parent=0 // loop_pre_header
    _
  $region3: #{siadv_attack_forward.1} parent=0 // loop_header
    %s15 = sphi 0, %s19
    %p16 = scmp.ge.s32.totalorder %s15, 4
    %s25 = sphi 0, %s27
    %s28 = sphi 0, %s25
    %s29 = sphi 0, %s28
    %s45 = sphi 0, %s29
    %s51 = sphi 0, %s53
    %s54 = sphi 0, %s51
    %s55 = sphi 0, %s54
    %s71 = sphi 0, %s55
    %s77 = sphi 0, %s79
    %s80 = sphi 0, %s77
    %s81 = sphi 0, %s80
    %s97 = sphi 0, %s81
    %s101 = sphi 0, %s101
    %s103 = sphi 0, %s101
    %s104 = sphi 0, %s103
    %s118 = sphi 0, %s104
    %s122 = sphi 0, %s122
    %s124 = sphi 0, %s122
    %s125 = sphi 0, %s124
    %s139 = sphi 0, %s125
    %s143 = sphi 0, %s143
    %s145 = sphi 0, %s143
    %s146 = sphi 0, %s145
    %s160 = sphi 0, %s146
    %s164 = sphi 0, %s164
    %s166 = sphi 0, %s164
    %s167 = sphi 0, %s166
    %s181 = sphi 0, %s167
    %s187 = sphi 0, %s189
    %s190 = sphi 0, %s187
    %s191 = sphi 0, %s190
    %s207 = sphi 0, %s191
    %s213 = sphi 0, %s215
    %s216 = sphi 0, %s213
    %s217 = sphi 0, %s216
    %s233 = sphi 0, %s217
  $region4: #{siadv_attack_forward.1} parent=0 // loop_header_branch
    %18 = sbr.rel (%p16) target = $region8
  $region5: #{siadv_attack_forward.1} parent=0 // loop_body
    %s20 = ssub.s32 %s15, 1
    %s21 = ssub.s32 %s15, 2
    %s22 = sadd.s32 %s15, 1
    %s23 = ssub.s32 %s15, %s22
    %p24 = scmp.eq.s32.totalorder %s23, 0
    %s26 = sadd.s32 %s25, 1
    %s27 = scalar_select %p24, %s25, %s26
    %p30 = pneg %p24
    %p31 = scmp.eq.s32.totalorder %s15, 1
    %p32 = por %p30, %p31
    %p33 = scmp.ne.s32.totalorder %s25, %s28
    %p34 = scmp.eq.s32.totalorder %s15, 0
    %p35 = por %p33, %p34
    %p36 = scmp.ne.s32.totalorder %s25, %s28
    %p37 = scmp.eq.s32.totalorder %s20, 1
    %p38 = por %p36, %p37
    %p39 = scmp.ne.s32.totalorder %s28, %s29
    %p40 = scmp.eq.s32.totalorder %s20, 0
    %p41 = por %p39, %p40
    %p42 = scmp.ne.s32.totalorder %s28, %s29
    %p43 = scmp.eq.s32.totalorder %s21, 1
    %p44 = por %p42, %p43
    %p46 = scmp.ne.s32.totalorder %s29, %s45
    %p47 = scmp.eq.s32.totalorder %s21, 0
    %p48 = por %p46, %p47
    %s49 = ssub.s32 %s15, %s22
    %p50 = scmp.eq.s32.totalorder %s49, 0
    %s52 = sadd.s32 %s51, 1
    %s53 = scalar_select %p50, %s51, %s52
    %p56 = pneg %p50
    %p57 = scmp.eq.s32.totalorder %s15, 1
    %p58 = por %p56, %p57
    %p59 = scmp.ne.s32.totalorder %s51, %s54
    %p60 = scmp.eq.s32.totalorder %s15, 0
    %p61 = por %p59, %p60
    %p62 = scmp.ne.s32.totalorder %s51, %s54
    %p63 = scmp.eq.s32.totalorder %s20, 1
    %p64 = por %p62, %p63
    %p65 = scmp.ne.s32.totalorder %s54, %s55
    %p66 = scmp.eq.s32.totalorder %s20, 0
    %p67 = por %p65, %p66
    %p68 = scmp.ne.s32.totalorder %s54, %s55
    %p69 = scmp.eq.s32.totalorder %s21, 1
    %p70 = por %p68, %p69
    %p72 = scmp.ne.s32.totalorder %s55, %s71
    %p73 = scmp.eq.s32.totalorder %s21, 0
    %p74 = por %p72, %p73
    %s75 = ssub.s32 %s15, %s22
    %p76 = scmp.eq.s32.totalorder %s75, 0
    %s78 = sadd.s32 %s77, 1
    %s79 = scalar_select %p76, %s77, %s78
    %p82 = pneg %p76
    %p83 = scmp.eq.s32.totalorder %s15, 1
    %p84 = por %p82, %p83
    %p85 = scmp.ne.s32.totalorder %s77, %s80
    %p86 = scmp.eq.s32.totalorder %s15, 0
    %p87 = por %p85, %p86
    %p88 = scmp.ne.s32.totalorder %s77, %s80
    %p89 = scmp.eq.s32.totalorder %s20, 1
    %p90 = por %p88, %p89
    %p91 = scmp.ne.s32.totalorder %s80, %s81
    %p92 = scmp.eq.s32.totalorder %s20, 0
    %p93 = por %p91, %p92
    %p94 = scmp.ne.s32.totalorder %s80, %s81
    %p95 = scmp.eq.s32.totalorder %s21, 1
    %p96 = por %p94, %p95
    %p98 = scmp.ne.s32.totalorder %s81, %s97
    %p99 = scmp.eq.s32.totalorder %s21, 0
    %p100 = por %p98, %p99
    %s102 = sadd.s32 %s101, 1
    %p105 = scmp.eq.s32.totalorder %s15, 1
    %p106 = scmp.ne.s32.totalorder %s101, %s103
    %p107 = scmp.eq.s32.totalorder %s15, 0
    %p108 = por %p106, %p107
    %p109 = scmp.ne.s32.totalorder %s101, %s103
    %p110 = scmp.eq.s32.totalorder %s20, 1
    %p111 = por %p109, %p110
    %p112 = scmp.ne.s32.totalorder %s103, %s104
    %p113 = scmp.eq.s32.totalorder %s20, 0
    %p114 = por %p112, %p113
    %p115 = scmp.ne.s32.totalorder %s103, %s104
    %p116 = scmp.eq.s32.totalorder %s21, 1
    %p117 = por %p115, %p116
    %p119 = scmp.ne.s32.totalorder %s104, %s118
    %p120 = scmp.eq.s32.totalorder %s21, 0
    %p121 = por %p119, %p120
    %s123 = sadd.s32 %s122, 1
    %p126 = scmp.eq.s32.totalorder %s15, 1
    %p127 = scmp.ne.s32.totalorder %s122, %s124
    %p128 = scmp.eq.s32.totalorder %s15, 0
    %p129 = por %p127, %p128
    %p130 = scmp.ne.s32.totalorder %s122, %s124
    %p131 = scmp.eq.s32.totalorder %s20, 1
    %p132 = por %p130, %p131
    %p133 = scmp.ne.s32.totalorder %s124, %s125
    %p134 = scmp.eq.s32.totalorder %s20, 0
    %p135 = por %p133, %p134
    %p136 = scmp.ne.s32.totalorder %s124, %s125
    %p137 = scmp.eq.s32.totalorder %s21, 1
    %p138 = por %p136, %p137
    %p140 = scmp.ne.s32.totalorder %s125, %s139
    %p141 = scmp.eq.s32.totalorder %s21, 0
    %p142 = por %p140, %p141
    %s144 = sadd.s32 %s143, 1
    %p147 = scmp.eq.s32.totalorder %s15, 1
    %p148 = scmp.ne.s32.totalorder %s143, %s145
    %p149 = scmp.eq.s32.totalorder %s15, 0
    %p150 = por %p148, %p149
    %p151 = scmp.ne.s32.totalorder %s143, %s145
    %p152 = scmp.eq.s32.totalorder %s20, 1
    %p153 = por %p151, %p152
    %p154 = scmp.ne.s32.totalorder %s145, %s146
    %p155 = scmp.eq.s32.totalorder %s20, 0
    %p156 = por %p154, %p155
    %p157 = scmp.ne.s32.totalorder %s145, %s146
    %p158 = scmp.eq.s32.totalorder %s21, 1
    %p159 = por %p157, %p158
    %p161 = scmp.ne.s32.totalorder %s146, %s160
    %p162 = scmp.eq.s32.totalorder %s21, 0
    %p163 = por %p161, %p162
    %s165 = sadd.s32 %s164, 1
    %p168 = scmp.eq.s32.totalorder %s15, 1
    %p169 = scmp.ne.s32.totalorder %s164, %s166
    %p170 = scmp.eq.s32.totalorder %s15, 0
    %p171 = por %p169, %p170
    %p172 = scmp.ne.s32.totalorder %s164, %s166
    %p173 = scmp.eq.s32.totalorder %s20, 1
    %p174 = por %p172, %p173
    %p175 = scmp.ne.s32.totalorder %s166, %s167
    %p176 = scmp.eq.s32.totalorder %s20, 0
    %p177 = por %p175, %p176
    %p178 = scmp.ne.s32.totalorder %s166, %s167
    %p179 = scmp.eq.s32.totalorder %s21, 1
    %p180 = por %p178, %p179
    %p182 = scmp.ne.s32.totalorder %s167, %s181
    %p183 = scmp.eq.s32.totalorder %s21, 0
    %p184 = por %p182, %p183
    %s185 = ssub.s32 %s15, %s22
    %p186 = scmp.eq.s32.totalorder %s185, 0
    %s188 = sadd.s32 %s187, 1
    %s189 = scalar_select %p186, %s187, %s188
    %p192 = pneg %p186
    %p193 = scmp.eq.s32.totalorder %s15, 1
    %p194 = por %p192, %p193
    %p195 = scmp.ne.s32.totalorder %s187, %s190
    %p196 = scmp.eq.s32.totalorder %s15, 0
    %p197 = por %p195, %p196
    %p198 = scmp.ne.s32.totalorder %s187, %s190
    %p199 = scmp.eq.s32.totalorder %s20, 1
    %p200 = por %p198, %p199
    %p201 = scmp.ne.s32.totalorder %s190, %s191
    %p202 = scmp.eq.s32.totalorder %s20, 0
    %p203 = por %p201, %p202
    %p204 = scmp.ne.s32.totalorder %s190, %s191
    %p205 = scmp.eq.s32.totalorder %s21, 1
    %p206 = por %p204, %p205
    %p208 = scmp.ne.s32.totalorder %s191, %s207
    %p209 = scmp.eq.s32.totalorder %s21, 0
    %p210 = por %p208, %p209
    %s211 = ssub.s32 %s15, %s22
    %p212 = scmp.eq.s32.totalorder %s211, 0
    %s214 = sadd.s32 %s213, 1
    %s215 = scalar_select %p212, %s213, %s214
    %p218 = pneg %p212
    %p219 = scmp.eq.s32.totalorder %s15, 1
    %p220 = por %p218, %p219
    %p221 = scmp.ne.s32.totalorder %s213, %s216
    %p222 = scmp.eq.s32.totalorder %s15, 0
    %p223 = por %p221, %p222
    %p224 = scmp.ne.s32.totalorder %s213, %s216
    %p225 = scmp.eq.s32.totalorder %s20, 1
    %p226 = por %p224, %p225
    %p227 = scmp.ne.s32.totalorder %s216, %s217
    %p228 = scmp.eq.s32.totalorder %s20, 0
    %p229 = por %p227, %p228
    %p230 = scmp.ne.s32.totalorder %s216, %s217
    %p231 = scmp.eq.s32.totalorder %s21, 1
    %p232 = por %p230, %p231
    %p234 = scmp.ne.s32.totalorder %s217, %s233
    %p235 = scmp.eq.s32.totalorder %s21, 0
    %p236 = por %p234, %p235
    %p237 = scmp.le.s32.totalorder 1, %s15
    %p238 = scmp.lt.s32.totalorder %s15, 3
    %p239 = pnand %p237, %p238
    %p240 = pneg %p239
    // Predicated region
    $region9: #{siadv_attack_forward.1} parent=5 // pred_check
      _
    $region10: #{siadv_attack_forward.1} parent=5 // pred_check_branch
      %242 = sbr.rel (%p239) target = $region12
    $region11: #{siadv_attack_forward.1} parent=5 // pred_region
      %s243 = ssub.s32 %s15, 1
      // Predicated region
      $region13: #{siadv_attack_forward.1} parent=11 // pred_check
        %p244 = pneg %p114
      $region14: #{siadv_attack_forward.1} parent=11 // pred_check_branch
        %246 = sbr.rel (%p244) target = $region16
      $region15: #{siadv_attack_forward.1} parent=11 // pred_region
        _
      $region16: #{siadv_attack_forward.1} parent=11 // pred_fallthru
        _
      // Predicated region
      $region17: #{siadv_attack_forward.1} parent=11 // pred_check
        %p247 = pneg %p135
      $region18: #{siadv_attack_forward.1} parent=11 // pred_check_branch
        %249 = sbr.rel (%p247) target = $region20
      $region19: #{siadv_attack_forward.1} parent=11 // pred_region
        _
      $region20: #{siadv_attack_forward.1} parent=11 // pred_fallthru
        _
      // Predicated region
      $region21: #{siadv_attack_forward.1} parent=11 // pred_check
        %p250 = pneg %p156
      $region22: #{siadv_attack_forward.1} parent=11 // pred_check_branch
        %252 = sbr.rel (%p250) target = $region24
      $region23: #{siadv_attack_forward.1} parent=11 // pred_region
        _
      $region24: #{siadv_attack_forward.1} parent=11 // pred_fallthru
        _
      // Predicated region
      $region25: #{siadv_attack_forward.1} parent=11 // pred_check
        %p253 = pneg %p177
      $region26: #{siadv_attack_forward.1} parent=11 // pred_check_branch
        %255 = sbr.rel (%p253) target = $region28
      $region27: #{siadv_attack_forward.1} parent=11 // pred_region
        _
      $region28: #{siadv_attack_forward.1} parent=11 // pred_fallthru
        _
    $region12: #{siadv_attack_forward.1} parent=5 // pred_fallthru
      _
    %p256 = scmp.lt.s32.totalorder %s15, 2
    // Predicated region
    $region29: #{siadv_attack_forward.1} parent=5 // pred_check
      %p257 = pneg %p256
    $region30: #{siadv_attack_forward.1} parent=5 // pred_check_branch
      %259 = sbr.rel (%p257) target = $region32
    $region31: #{siadv_attack_forward.1} parent=5 // pred_region
      // Predicated region
      $region33: #{siadv_attack_forward.1} parent=31 // pred_check
        %p260 = pneg %p35
      $region34: #{siadv_attack_forward.1} parent=31 // pred_check_branch
        %262 = sbr.rel (%p260) target = $region36
      $region35: #{siadv_attack_forward.1} parent=31 // pred_region
        %p263 = scmp.lt.s32.totalorder %s15, 1
        %s264 = scalar_select %p263, %s15, 1
        %s265 = smul.addr %s264, 4
        %s266 = scalar_lea.vmem %s0, %s265
      $region36: #{siadv_attack_forward.1} parent=31 // pred_fallthru
        _
      // Predicated region
      $region37: #{siadv_attack_forward.1} parent=31 // pred_check
        %p267 = pneg %p61
      $region38: #{siadv_attack_forward.1} parent=31 // pred_check_branch
        %269 = sbr.rel (%p267) target = $region40
      $region39: #{siadv_attack_forward.1} parent=31 // pred_region
        %p270 = scmp.lt.s32.totalorder %s15, 1
        %s271 = scalar_select %p270, %s15, 1
        %s272 = smul.addr %s271, 4
        %s273 = scalar_lea.vmem %s1, %s272
      $region40: #{siadv_attack_forward.1} parent=31 // pred_fallthru
        _
      // Predicated region
      $region41: #{siadv_attack_forward.1} parent=31 // pred_check
        %p274 = pneg %p87
      $region42: #{siadv_attack_forward.1} parent=31 // pred_check_branch
        %276 = sbr.rel (%p274) target = $region44
      $region43: #{siadv_attack_forward.1} parent=31 // pred_region
        %p277 = scmp.lt.s32.totalorder %s15, 1
        %s278 = scalar_select %p277, %s15, 1
        %s279 = scalar_lea.vmem %s2, %s278
      $region44: #{siadv_attack_forward.1} parent=31 // pred_fallthru
        _
    $region32: #{siadv_attack_forward.1} parent=5 // pred_fallthru
      _
    %p280 = scmp.le.s32.totalorder 1, %s15
    %p281 = scmp.lt.s32.totalorder %s15, 3
    %p282 = pnand %p280, %p281
    %p283 = pneg %p282
    // Predicated region
    $region45: #{siadv_attack_forward.1} parent=5 // pred_check
      _
    $region46: #{siadv_attack_forward.1} parent=5 // pred_check_branch
      %285 = sbr.rel (%p282) target = $region48
    $region47: #{siadv_attack_forward.1} parent=5 // pred_region
      %s286 = ssub.s32 %s15, 1
      %p287 = scmp.lt.s32.totalorder %s20, 1
      %s288 = scalar_select %p287, %s20, 1
      %s289 = smul.addr %s288, 4
      %s290 = scalar_lea.vmem %s0, %s289
      %p291 = pneg %p41
      %p292 = pneg %p38
      %p293 = scmp.lt.s32.totalorder %s20, 1
      %s294 = scalar_select %p293, %s20, 1
      %s295 = smul.addr %s294, 4
      %s296 = scalar_lea.vmem %s1, %s295
      %p297 = pneg %p67
      %p298 = pneg %p64
      %p299 = scmp.lt.s32.totalorder %s20, 1
      %s300 = scalar_select %p299, %s20, 1
      %s301 = scalar_lea.vmem %s2, %s300
      %p302 = pneg %p93
      %p303 = pneg %p90
      %p304 = pneg %p114
      %p305 = pneg %p111
      %p306 = pneg %p135
      %p307 = pneg %p132
      %p308 = pneg %p156
      %p309 = pneg %p153
      %p310 = pneg %p177
      %p311 = pneg %p174
      %p312 = pneg %p203
      %p313 = pneg %p200
      %p314 = scmp.lt.s32.totalorder %s20, 1
      %s315 = scalar_select %p314, %s20, 1
      %s316 = smul.addr %s315, 4
      %s317 = scalar_lea.vmem %s7, %s316
      %p318 = pneg %p229
      %p319 = pneg %p226
      %p320 = scmp.lt.s32.totalorder %s20, 1
      %s321 = scalar_select %p320, %s20, 1
      %s322 = scalar_lea.vmem %s8, %s321
      %p323 = scmp.lt.s32.totalorder %s20, 1
      %s324 = scalar_select %p323, %s20, 1
      %s325 = smul.addr %s324, 4
      %s326 = scalar_lea.vmem %s0, %s325
      %p327 = scmp.lt.s32.totalorder %s20, 1
      %s328 = scalar_select %p327, %s20, 1
      %s329 = smul.addr %s328, 4
      %s330 = scalar_lea.vmem %s1, %s329
      %p331 = scmp.lt.s32.totalorder %s20, 1
      %s332 = scalar_select %p331, %s20, 1
      %s333 = scalar_lea.vmem %s2, %s332
      %p334 = scmp.lt.s32.totalorder %s20, 1
      %s335 = scalar_select %p334, %s20, 1
      %s336 = smul.addr %s335, 4
      %s337 = scalar_lea.vmem %s7, %s336
      %p338 = scmp.lt.s32.totalorder %s20, 1
      %s339 = scalar_select %p338, %s20, 1
      %s340 = scalar_lea.vmem %s8, %s339
      %v341 = vld [vmem:[%s330] sm:$0x7]
      %v342 = vld [vmem:[%s326] sm:$0x7]
      %v343 = vld [vmem:[%s333] sm:$0x1]
      %v344 = vld [vmem:[%s3] sm:$0xff]
      %v345 = vld [vmem:[%s3 + $0x8] sm:$0xff]
      %v346 = vld [vmem:[%s3 + $0x10] sm:$0xff]
      %v347 = vld [vmem:[%s3 + $0x18] sm:$0xff]
      %v348 = vld [vmem:[%s4] sm:$0xff]
      %v349 = vld [vmem:[%s4 + $0x8] sm:$0xff]
      %v350 = vld [vmem:[%s4 + $0x10] sm:$0xff]
      %v351 = vld [vmem:[%s4 + $0x18] sm:$0xff]
      %v352 = vld [vmem:[%s5] sm:$0xff]
      %v353 = vld [vmem:[%s5 + $0x8] sm:$0xff]
      %v354 = vld [vmem:[%s5 + $0x10] sm:$0xff]
      %v355 = vld [vmem:[%s5 + $0x18] sm:$0xff]
      %v356 = vld [vmem:[%s6] sm:$0x1]
      %v357 = vmul.f32 %v341, %v341
      %v358 = vsub.f32 1.0, %v357
      %v359 = vmax.f32 %v358, 0.0
      %v360 = vadd.f32 %v359, 1e-10
      %v361 = vrsqrt.pop %v360
      %v362 = vmul.f32 %v360, %v361
      %vm363 = vcmp.eq.f32.partialorder %v360, inf
      %v364 = vsel %vm363, %v360, %v362
      %vm365 = vcmp.eq.f32.partialorder %v360, 0.0
      %v366 = vand.u32 %v360, 2147483648
      %v367 = vsel %vm365, %v366, %v364
      %v369 = vrot.slane %v367, 1
      %v371 = vrcp.pop %v369
      %v372 = vmul.f32 %v341, %v371
      %v373 = vsub.f32 0.0, %v341
      %v374 = vrot.slane %v367, 2
      %v376 = vrcp.pop %v374
      %v377 = vmul.f32 %v373, %v376
      %v378 = vmul.f32 %v372, %v372
      %v379 = vsub.f32 1.0, %v378
      %v381 = vrot.slane %v341, 1
      %v383 = vmul.f32 %v379, %v381
      %v384 = vadd.f32 %v378, %v383
      %v386 = vrot.slane %v377, 7
      %v388 = vmul.f32 %v372, %v386
      %v389 = vsub.f32 1.0, %v341
      %v391 = vrot.slane %v389, 1
      %v393 = vmul.f32 %v388, %v391
      %v394 = vmul.f32 %v377, %v374
      %v395 = vmul.f32 %v377, %v377
      %v396 = vsub.f32 1.0, %v395
      %v397 = vrot.slane %v341, 2
      %v399 = vmul.f32 %v396, %v397
      %v400 = vadd.f32 %v395, %v399
      %v401 = vsub.f32 0.0, %v372
      %v402 = vmul.f32 %v401, %v369
      %403 = vst [vmem:[#allocation2] sm:$0x7] %v342
      loop: start=0, step=1, limit=4
      $region49: #{siadv_attack_forward.1} parent=47 // loop_pre_header
        _
      $region50: #{siadv_attack_forward.1} parent=47 // loop_header
        %s405 = sphi 0, %s409
        %p406 = scmp.ge.s32.totalorder %s405, 4
      $region51: #{siadv_attack_forward.1} parent=47 // loop_header_branch
        %408 = sbr.rel (%p406) target = $region55
      $region52: #{siadv_attack_forward.1} parent=47 // loop_body
        %v410 = vld [vmem:[#allocation2] sm:$0x7]
        %v411 = vmul.f32 %v410, %v341
        %v413 = vrot.slane %v411, 1
        %v415 = vadd.f32 %v411, %v413
        %v416 = vrot.slane %v411, 2
        %v418 = vadd.f32 %v415, %v416
        %v419 = vmul.f32 %v418, %v341
        %v420 = vmul.f32 %v418, %v381
        %v421 = vmul.f32 %v418, %v397
        %v422 = vadd.f32 %v410, %v419
        %v424 = vrot.slane %v420, 7
        %v426 = vadd.f32 %v410, %v424
        %v428 = vrot.slane %v421, 6
        %v430 = vadd.f32 %v410, %v428
        %v432 = vrot.slane %v422, 7
        %v434 = vmul.f32 %v384, %v432
        %v435 = vmul.f32 %v393, %v426
        %v436 = vadd.f32 %v434, %v435
        %v438 = vrot.slane %v430, 2
        %v440 = vmul.f32 %v394, %v438
        %v442 = vrot.slane %v440, 7
        %v444 = vadd.f32 %v436, %v442
        %v445 = vmul.f32 %v393, %v432
        %v447 = vrot.slane %v426, 1
        %v449 = vmul.f32 %v400, %v447
        %v451 = vrot.slane %v449, 7
        %v453 = vadd.f32 %v445, %v451
        %v454 = vrot.slane %v430, 1
        %v456 = vmul.f32 %v402, %v454
        %v457 = vadd.f32 %v453, %v456
        %v458 = vsub.f32 0.0, %v394
        %v459 = vmul.f32 %v458, %v422
        %v460 = vmul.f32 %v402, %v426
        %v462 = vrot.slane %v460, 1
        %v464 = vsub.f32 %v459, %v462
        %v465 = vmul.f32 %v341, %v430
        %v467 = vrot.slane %v465, 2
        %v469 = vadd.f32 %v464, %v467
        %v470 = vmul.f32 %v384, %v444
        %v471 = vmul.f32 %v393, %v457
        %v472 = vadd.f32 %v470, %v471
        %v473 = vmul.f32 %v394, %v469
        %v475 = vrot.slane %v473, 7
        %v477 = vsub.f32 %v472, %v475
        %v478 = vmul.f32 %v393, %v444
        %v480 = vrot.slane %v457, 1
        %v482 = vmul.f32 %v400, %v480
        %v484 = vrot.slane %v482, 7
        %v486 = vadd.f32 %v478, %v484
        %v488 = vrot.slane %v469, 7
        %v490 = vmul.f32 %v402, %v488
        %v491 = vsub.f32 %v486, %v490
        %v493 = vrot.slane %v444, 1
        %v495 = vmul.f32 %v394, %v493
        %v496 = vmul.f32 %v402, %v457
        %v498 = vrot.slane %v496, 1
        %v500 = vadd.f32 %v495, %v498
        %v501 = vrot.slane %v469, 6
        %v503 = vmul.f32 %v341, %v501
        %v505 = vrot.slane %v503, 2
        %v507 = vadd.f32 %v500, %v505
        %v509 = vrot.slane %v419, 7
        %v511 = vsub.f32 %v477, %v509
        %v512 = vsub.f32 %v491, %v424
        %v513 = vsub.f32 %v507, %v421
        %515 = vset.pattern.permute.xlu0 0
        %516 = vperm.xlu0 %515, %v344
        %v517 = vpop.permute.xlu0 %516
        %520 = vset.pattern.permute.xlu0 0
        %521 = vperm.xlu0 %520, %v345
        %v522 = vpop.permute.xlu0 %521
        %525 = vset.pattern.permute.xlu0 0
        %526 = vperm.xlu0 %525, %v346
        %v527 = vpop.permute.xlu0 %526
        %530 = vset.pattern.permute.xlu0 0
        %531 = vperm.xlu0 %530, %v347
        %v532 = vpop.permute.xlu0 %531
        %v534 = vlaneseq
        %v535 = vshrl.u32 %v534, 7
        %v536 = vsub.s32 1, %v535
        %v537 = vrot.slane %v511, %v536
        %v538 = vmul.f32 %v517, %v537
        %v539 = vmul.f32 %v522, %v537
        %v540 = vmul.f32 %v527, %v537
        %v541 = vmul.f32 %v532, %v537
        %542 = vset.pattern.permute.xlu0 1
        %543 = vperm.xlu0 %542, %v344
        %v544 = vpop.permute.xlu0 %543
        %546 = vset.pattern.permute.xlu0 1
        %547 = vperm.xlu0 %546, %v345
        %v548 = vpop.permute.xlu0 %547
        %550 = vset.pattern.permute.xlu0 1
        %551 = vperm.xlu0 %550, %v346
        %v552 = vpop.permute.xlu0 %551
        %554 = vset.pattern.permute.xlu0 1
        %555 = vperm.xlu0 %554, %v347
        %v556 = vpop.permute.xlu0 %555
        %v558 = vlaneseq
        %v559 = vshrl.u32 %v558, 7
        %v560 = vsub.s32 1, %v559
        %v561 = vrot.slane %v512, %v560
        %v562 = vmul.f32 %v544, %v561
        %v563 = vmul.f32 %v548, %v561
        %v564 = vmul.f32 %v552, %v561
        %v565 = vmul.f32 %v556, %v561
        %v566 = vadd.f32 %v538, %v562
        %v567 = vadd.f32 %v539, %v563
        %v568 = vadd.f32 %v540, %v564
        %v569 = vadd.f32 %v541, %v565
        %570 = vset.pattern.permute.xlu0 2
        %571 = vperm.xlu0 %570, %v344
        %v572 = vpop.permute.xlu0 %571
        %574 = vset.pattern.permute.xlu0 2
        %575 = vperm.xlu0 %574, %v345
        %v576 = vpop.permute.xlu0 %575
        %578 = vset.pattern.permute.xlu0 2
        %579 = vperm.xlu0 %578, %v346
        %v580 = vpop.permute.xlu0 %579
        %582 = vset.pattern.permute.xlu0 2
        %583 = vperm.xlu0 %582, %v347
        %v584 = vpop.permute.xlu0 %583
        %v586 = vlaneseq
        %v587 = vshrl.u32 %v586, 7
        %v588 = vsub.s32 0, %v587
        %v589 = vrot.slane %v513, %v588
        %v590 = vmul.f32 %v572, %v589
        %v591 = vmul.f32 %v576, %v589
        %v592 = vmul.f32 %v580, %v589
        %v593 = vmul.f32 %v584, %v589
        %v594 = vadd.f32 %v566, %v590
        %v595 = vadd.f32 %v567, %v591
        %v596 = vadd.f32 %v568, %v592
        %v597 = vadd.f32 %v569, %v593
        %599 = vset.pattern.permute.xlu0 0
        %600 = vperm.xlu0 %599, %v348
        %v601 = vpop.permute.xlu0 %600
        %604 = vset.pattern.permute.xlu0 0
        %605 = vperm.xlu0 %604, %v349
        %v606 = vpop.permute.xlu0 %605
        %609 = vset.pattern.permute.xlu0 0
        %610 = vperm.xlu0 %609, %v350
        %v611 = vpop.permute.xlu0 %610
        %614 = vset.pattern.permute.xlu0 0
        %615 = vperm.xlu0 %614, %v351
        %v616 = vpop.permute.xlu0 %615
        %v618 = vadd.f32 %v594, %v601
        %v619 = vadd.f32 %v595, %v606
        %v620 = vadd.f32 %v596, %v611
        %v621 = vadd.f32 %v597, %v616
        %v622 = vmax.f32 %v618, 0.0
        %v623 = vmax.f32 %v619, 0.0
        %v624 = vmax.f32 %v620, 0.0
        %v625 = vmax.f32 %v621, 0.0
        %626 = vmax.xlane.f32.xlu0 %v622
        %v627 = vpop.xlane.xlu0 %626
        %628 = vmax.xlane.f32.xlu0 %v623
        %v629 = vpop.xlane.xlu0 %628
        %630 = vmax.xlane.f32.xlu0 %v624
        %v631 = vpop.xlane.xlu0 %630
        %632 = vmax.xlane.f32.xlu0 %v625
        %v633 = vpop.xlane.xlu0 %632
        %v634 = vmul.f32 %v627, %v352
        %v635 = vmul.f32 %v629, %v353
        %v636 = vmul.f32 %v631, %v354
        %v637 = vmul.f32 %v633, %v355
        %vm638 = vcmask 64512
        %v639 = vsel %vm638, %v634, 0.0
        %v640 = vsel %vm638, %v635, 0.0
        %v641 = vadd.f32 %v639, %v640
        %v642 = vsel %vm638, %v636, 0.0
        %v643 = vadd.f32 %v641, %v642
        %v644 = vsel %vm638, %v637, 0.0
        %v645 = vadd.f32 %v643, %v644
        %v646 = vrot.slane %v645, 4
        %v647 = vadd.f32 %v645, %v646
        %v648 = vrot.slane %v647, 2
        %v649 = vadd.f32 %v647, %v648
        %v650 = vrot.slane %v649, 1
        %v651 = vadd.f32 %v649, %v650
        %v652 = vadd.f32 %v651, %v356
        %v653 = vmul.f32 %v343, %v652
        %vm654 = vcmask 57344
        %v655 = vsel %vm654, %v653, 0.0
        %656 = vadd.xlane.f32.xlu0 %v655
        %v657 = vpop.xlane.xlu0 %656
        %v658 = vrot.slane %v657, 4
        %v659 = vadd.f32 %v657, %v658
        %v660 = vrot.slane %v659, 2
        %v661 = vadd.f32 %v659, %v660
        %v662 = vrot.slane %v661, 1
        %v663 = vadd.f32 %v661, %v662
        %s664 = vtos %v663
        %v665 = vsub.f32 1.0, %v343
        %v666 = vmul.f32 %v665, %v652
        %v667 = vmul.f32 %v343, 10000.0
        %v668 = vsub.f32 %v666, %v667
        %v669 = vsel %vm654, %v668, -inf
        %670 = vmax.xlane.f32.xlu0 %v669
        %v671 = vpop.xlane.xlu0 %670
        %v672 = vrot.slane %v671, 4
        %v673 = vmax.f32 %v671, %v672
        %v674 = vrot.slane %v673, 2
        %v675 = vmax.f32 %v673, %v674
        %v676 = vrot.slane %v675, 1
        %v677 = vmax.f32 %v675, %v676
        %s678 = vtos %v677
        %v679 = vlaneseq
        %v680 = vand.u32 %v679, 127
        %v681 = vstv %s678
        %vm682 = vcmp.eq.f32.partialorder %v668, %v681
        %v683 = vsel %vm682, %v680, 8
        %v684 = vsel %vm654, %v683, 2147483647
        %v685 = vand.u32 %v684, 65535
        %v686 = vshra.s32 %v684, 16
        %v687 = vcvt.s32.f32 %v685
        %v688 = vcvt.s32.f32 %v686
        %689 = vmin.xlane.f32.xlu0 %v688
        %v690 = vpop.xlane.xlu0 %689
        %vm691 = vcmp.eq.f32.partialorder %v688, %v690
        %v692 = vsel %vm691, %v687, inf
        %693 = vmin.xlane.f32.xlu0 %v692
        %v694 = vpop.xlane.xlu0 %693
        %v695 = vcvt.f32.s32 %v694
        %v696 = vcvt.f32.s32 %v690
        %v697 = vshll.u32 %v696, 16
        %v698 = vadd.s32 %v697, %v695
        %v699 = vrot.slane %v698, 4
        %vm700 = vcmp.lt.s32.totalorder %v698, %v699
        %v701 = vsel %vm700, %v698, %v699
        %v702 = vrot.slane %v701, 2
        %vm703 = vcmp.lt.s32.totalorder %v701, %v702
        %v704 = vsel %vm703, %v701, %v702
        %v705 = vrot.slane %v704, 1
        %vm706 = vcmp.lt.s32.totalorder %v704, %v705
        %v707 = vsel %vm706, %v704, %v705
        %s708 = vtos %v707
        %v709 = vstv %s708
        %vm710 = vcmp.eq.s32.totalorder %v680, %v709
        %v711 = vsel %vm710, 1, 0
        %v712 = vcvt.s32.f32 %v711
        %s713 = ssub.f32 %s664, %s678
        %p714 = scmp.gt.f32.partialorder %s713, 0.0
        %s715 = scalar_select %p714, 1.0, 0.0
        %v716 = vsub.f32 %v343, %v712
        %v717 = vstv %s715
        %v718 = vmul.f32 %v717, %v716
        %v720 = vlaneseq
        %v721 = vshrl.u32 %v720, 7
        %v722 = vsub.s32 0, %v721
        %v723 = vrot.slane %v718, %v722
        %v725 = vmul.f32 %v352, %v723
        %v726 = vmul.f32 %v353, %v723
        %v727 = vmul.f32 %v354, %v723
        %v728 = vmul.f32 %v355, %v723
        %v729 = vsel %vm638, %v725, 0.0
        %730 = vadd.xlane.f32.xlu0 %v729
        %v731 = vpop.xlane.xlu0 %730
        %v732 = vsel %vm638, %v726, 0.0
        %733 = vadd.xlane.f32.xlu0 %v732
        %v734 = vpop.xlane.xlu0 %733
        %v735 = vsel %vm638, %v727, 0.0
        %736 = vadd.xlane.f32.xlu0 %v735
        %v737 = vpop.xlane.xlu0 %736
        %v738 = vsel %vm638, %v728, 0.0
        %739 = vadd.xlane.f32.xlu0 %v738
        %v740 = vpop.xlane.xlu0 %739
        %vm741 = vcmp.eq.f32.partialorder %v622, %v627
        %vm742 = vcmp.eq.f32.partialorder %v623, %v629
        %vm743 = vcmp.eq.f32.partialorder %v624, %v631
        %vm744 = vcmp.eq.f32.partialorder %v625, %v633
        %v745 = vsel %vm741, %v680, 128
        %v746 = vsel %vm742, %v680, 128
        %v747 = vsel %vm743, %v680, 128
        %v748 = vsel %vm744, %v680, 128
        %v749 = vand.u32 %v745, 65535
        %v750 = vshra.s32 %v745, 16
        %v751 = vcvt.s32.f32 %v749
        %v752 = vcvt.s32.f32 %v750
        %753 = vmin.xlane.f32.xlu0 %v752
        %v754 = vpop.xlane.xlu0 %753
        %vm755 = vcmp.eq.f32.partialorder %v752, %v754
        %v756 = vsel %vm755, %v751, inf
        %757 = vmin.xlane.f32.xlu0 %v756
        %v758 = vpop.xlane.xlu0 %757
        %v759 = vcvt.f32.s32 %v758
        %v760 = vcvt.f32.s32 %v754
        %v761 = vshll.u32 %v760, 16
        %v762 = vadd.s32 %v761, %v759
        %v763 = vand.u32 %v746, 65535
        %v764 = vshra.s32 %v746, 16
        %v765 = vcvt.s32.f32 %v763
        %v766 = vcvt.s32.f32 %v764
        %767 = vmin.xlane.f32.xlu0 %v766
        %v768 = vpop.xlane.xlu0 %767
        %vm769 = vcmp.eq.f32.partialorder %v766, %v768
        %v770 = vsel %vm769, %v765, inf
        %771 = vmin.xlane.f32.xlu0 %v770
        %v772 = vpop.xlane.xlu0 %771
        %v773 = vcvt.f32.s32 %v772
        %v774 = vcvt.f32.s32 %v768
        %v775 = vshll.u32 %v774, 16
        %v776 = vadd.s32 %v775, %v773
        %v777 = vand.u32 %v747, 65535
        %v778 = vshra.s32 %v747, 16
        %v779 = vcvt.s32.f32 %v777
        %v780 = vcvt.s32.f32 %v778
        %781 = vmin.xlane.f32.xlu0 %v780
        %v782 = vpop.xlane.xlu0 %781
        %vm783 = vcmp.eq.f32.partialorder %v780, %v782
        %v784 = vsel %vm783, %v779, inf
        %785 = vmin.xlane.f32.xlu0 %v784
        %v786 = vpop.xlane.xlu0 %785
        %v787 = vcvt.f32.s32 %v786
        %v788 = vcvt.f32.s32 %v782
        %v789 = vshll.u32 %v788, 16
        %v790 = vadd.s32 %v789, %v787
        %v791 = vand.u32 %v748, 65535
        %v792 = vshra.s32 %v748, 16
        %v793 = vcvt.s32.f32 %v791
        %v794 = vcvt.s32.f32 %v792
        %795 = vmin.xlane.f32.xlu0 %v794
        %v796 = vpop.xlane.xlu0 %795
        %vm797 = vcmp.eq.f32.partialorder %v794, %v796
        %v798 = vsel %vm797, %v793, inf
        %799 = vmin.xlane.f32.xlu0 %v798
        %v800 = vpop.xlane.xlu0 %799
        %v801 = vcvt.f32.s32 %v800
        %v802 = vcvt.f32.s32 %v796
        %v803 = vshll.u32 %v802, 16
        %v804 = vadd.s32 %v803, %v801
        %vm805 = vcmp.eq.s32.totalorder %v680, %v762
        %vm806 = vcmp.eq.s32.totalorder %v680, %v776
        %vm807 = vcmp.eq.s32.totalorder %v680, %v790
        %vm808 = vcmp.eq.s32.totalorder %v680, %v804
        %v809 = vsel %vm805, 1, 0
        %v810 = vsel %vm806, 1, 0
        %v811 = vsel %vm807, 1, 0
        %v812 = vsel %vm808, 1, 0
        %v813 = vcvt.s32.f32 %v809
        %v814 = vcvt.s32.f32 %v810
        %v815 = vcvt.s32.f32 %v811
        %v816 = vcvt.s32.f32 %v812
        %v817 = vmul.f32 %v813, %v731
        %v818 = vmul.f32 %v814, %v734
        %v819 = vmul.f32 %v815, %v737
        %v820 = vmul.f32 %v816, %v740
        %vm821 = vcmp.gt.f32.partialorder %v618, 0.0
        %vm822 = vcmp.gt.f32.partialorder %v619, 0.0
        %vm823 = vcmp.gt.f32.partialorder %v620, 0.0
        %vm824 = vcmp.gt.f32.partialorder %v621, 0.0
        %v825 = vsel %vm821, 1, 0
        %v826 = vsel %vm822, 1, 0
        %v827 = vsel %vm823, 1, 0
        %v828 = vsel %vm824, 1, 0
        %v829 = vcvt.s32.f32 %v825
        %v830 = vcvt.s32.f32 %v826
        %v831 = vcvt.s32.f32 %v827
        %v832 = vcvt.s32.f32 %v828
        %v833 = vmul.f32 %v817, %v829
        %v834 = vmul.f32 %v818, %v830
        %v835 = vmul.f32 %v819, %v831
        %v836 = vmul.f32 %v820, %v832
        %v837 = vmul.f32 %v517, %v833
        %v838 = vmul.f32 %v522, %v834
        %v839 = vmul.f32 %v527, %v835
        %v840 = vmul.f32 %v532, %v836
        %v841 = vadd.f32 %v837, %v838
        %v842 = vadd.f32 %v841, %v839
        %v843 = vadd.f32 %v842, %v840
        %v844 = vrot.slane %v843, 4
        %v845 = vadd.f32 %v843, %v844
        %v846 = vrot.slane %v845, 2
        %v847 = vadd.f32 %v845, %v846
        %v848 = vrot.slane %v847, 1
        %v849 = vadd.f32 %v847, %v848
        %v850 = vmul.f32 %v544, %v833
        %v851 = vmul.f32 %v548, %v834
        %v852 = vmul.f32 %v552, %v835
        %v853 = vmul.f32 %v556, %v836
        %v854 = vadd.f32 %v850, %v851
        %v855 = vadd.f32 %v854, %v852
        %v856 = vadd.f32 %v855, %v853
        %v857 = vrot.slane %v856, 4
        %v858 = vadd.f32 %v856, %v857
        %v859 = vrot.slane %v858, 2
        %v860 = vadd.f32 %v858, %v859
        %v861 = vrot.slane %v860, 1
        %v862 = vadd.f32 %v860, %v861
        %v863 = vmul.f32 %v572, %v833
        %v864 = vmul.f32 %v576, %v834
        %v865 = vmul.f32 %v580, %v835
        %v866 = vmul.f32 %v584, %v836
        %v867 = vadd.f32 %v863, %v864
        %v868 = vadd.f32 %v867, %v865
        %v869 = vadd.f32 %v868, %v866
        %v870 = vrot.slane %v869, 4
        %v871 = vadd.f32 %v869, %v870
        %v872 = vrot.slane %v871, 2
        %v873 = vadd.f32 %v871, %v872
        %v874 = vrot.slane %v873, 1
        %v875 = vadd.f32 %v873, %v874
        %v876 = vmul.f32 %v384, %v849
        %v877 = vmul.f32 %v393, %v862
        %v878 = vadd.f32 %v876, %v877
        %v879 = vmul.f32 %v394, %v875
        %v881 = vrot.slane %v879, 7
        %v883 = vadd.f32 %v878, %v881
        %v884 = vmul.f32 %v393, %v849
        %v885 = vmul.f32 %v400, %v862
        %v887 = vrot.slane %v885, 7
        %v889 = vadd.f32 %v884, %v887
        %v890 = vmul.f32 %v402, %v875
        %v891 = vadd.f32 %v889, %v890
        %v892 = vmul.f32 %v883, %v883
        %v893 = vmul.f32 %v891, %v891
        %v894 = vadd.f32 %v892, %v893
        %v895 = vadd.f32 %v894, 0.0
        %v897 = vrot.slane %v895, 1
        %vm899 = vcmask 1040384
        %v900 = vsel %vm899, %v897, 0.0
        %901 = vadd.xlane.f32.xlu0 %v900
        %v902 = vpop.xlane.xlu0 %901
        %v903 = vrot.slane %v902, 4
        %v904 = vadd.f32 %v902, %v903
        %v905 = vrot.slane %v904, 2
        %v906 = vadd.f32 %v904, %v905
        %v907 = vrot.slane %v906, 1
        %v908 = vadd.f32 %v906, %v907
        %s909 = vtos %v908
        %v910 = vstv %s909
        %v911 = vrsqrt.pop %v910
        %v912 = vmul.f32 %v910, %v911
        %vm913 = vcmp.eq.f32.partialorder %v910, inf
        %v914 = vsel %vm913, %v910, %v912
        %vm915 = vcmp.eq.f32.partialorder %v910, 0.0
        %v916 = vand.u32 %v910, 2147483648
        %v917 = vsel %vm915, %v916, %v914
        %s918 = vtos %v917
        %s919 = sadd.f32 %s918, 1e-09
        %v920 = vstv %s919
        %v921 = vrcp.pop %v920
        %s922 = vtos %v921
        %s923 = smul.f32 0.3879794, %s922
        %v924 = vstv %s923
        %v925 = vmul.f32 %v924, %v883
        %v926 = vsub.f32 %v444, %v925
        %v927 = vmul.f32 %v924, %v891
        %v928 = vsub.f32 %v457, %v927
        %v929 = vmul.f32 %v924, 0.0
        %v930 = vsub.f32 %v469, %v929
        %v931 = vmul.f32 %v384, %v926
        %v932 = vmul.f32 %v393, %v928
        %v933 = vadd.f32 %v931, %v932
        %v934 = vmul.f32 %v394, %v930
        %v936 = vrot.slane %v934, 7
        %v938 = vsub.f32 %v933, %v936
        %v939 = vmul.f32 %v393, %v926
        %v941 = vrot.slane %v928, 1
        %v943 = vmul.f32 %v400, %v941
        %v945 = vrot.slane %v943, 7
        %v947 = vadd.f32 %v939, %v945
        %v949 = vrot.slane %v930, 7
        %v951 = vmul.f32 %v402, %v949
        %v952 = vsub.f32 %v947, %v951
        %v954 = vrot.slane %v926, 1
        %v956 = vmul.f32 %v394, %v954
        %v957 = vmul.f32 %v402, %v928
        %v959 = vrot.slane %v957, 1
        %v961 = vadd.f32 %v956, %v959
        %v962 = vrot.slane %v930, 6
        %v964 = vmul.f32 %v341, %v962
        %v966 = vrot.slane %v964, 2
        %v968 = vadd.f32 %v961, %v966
        %v969 = vsub.f32 %v938, %v509
        %v970 = vsub.f32 %v952, %v424
        %v971 = vsub.f32 %v968, %v421
        %v973 = vrot.slane %v342, 7
        %v975 = vsub.f32 %v969, %v973
        %v976 = vsub.f32 %v970, %v342
        %v977 = vrot.slane %v342, 2
        %v979 = vsub.f32 %v971, %v977
        %v980 = vmul.f32 %v975, %v975
        %v981 = vmul.f32 %v976, %v976
        %v982 = vadd.f32 %v980, %v981
        %v983 = vmul.f32 %v979, %v979
        %v985 = vrot.slane %v983, 7
        %v987 = vadd.f32 %v982, %v985
        %v988 = vrsqrt.pop %v987
        %v989 = vmul.f32 %v987, %v988
        %vm990 = vcmp.eq.f32.partialorder %v987, inf
        %v991 = vsel %vm990, %v987, %v989
        %vm992 = vcmp.eq.f32.partialorder %v987, 0.0
        %v993 = vand.u32 %v987, 2147483648
        %v994 = vsel %vm992, %v993, %v991
        %v995 = vadd.f32 %v994, 1e-09
        %v996 = vrcp.pop %v995
        %v997 = vmul.f32 0.16, %v996
        %v998 = vmin.f32 %v997, 1.0
        %v999 = vmul.f32 %v975, %v998
        %v1001 = vrot.slane %v999, 1
        %v1003 = vadd.f32 %v342, %v1001
        %1004 = vst [vmem:[#allocation2] sm:$0x1] %v1003
        %v1005 = vmul.f32 %v976, %v998
        %v1006 = vadd.f32 %v342, %v1005
        %1007 = vst [vmem:[#allocation2] sm:$0x2] %v1006
        %v1009 = vrot.slane %v998, 1
        %v1011 = vmul.f32 %v979, %v1009
        %v1013 = vrot.slane %v1011, 6
        %v1015 = vadd.f32 %v342, %v1013
        %1016 = vst [vmem:[#allocation2] sm:$0x4] %v1015
      $region53: #{siadv_attack_forward.1} parent=47 // loop_footer
        %s409 = sadd.s32 1, %s405
      $region54: #{siadv_attack_forward.1} parent=47 // loop_footer_branch
        %404 = sbr.rel target = $region50
      $region55: #{siadv_attack_forward.1} parent=47 // loop_exit
        _
      %v1017 = vld [vmem:[#allocation2] sm:$0x7]
      %1019 = vset.pattern.permute.xlu0 0
      %1020 = vperm.xlu0 %1019, %v344
      %v1021 = vpop.permute.xlu0 %1020
      %1024 = vset.pattern.permute.xlu0 0
      %1025 = vperm.xlu0 %1024, %v345
      %v1026 = vpop.permute.xlu0 %1025
      %1029 = vset.pattern.permute.xlu0 0
      %1030 = vperm.xlu0 %1029, %v346
      %v1031 = vpop.permute.xlu0 %1030
      %1034 = vset.pattern.permute.xlu0 0
      %1035 = vperm.xlu0 %1034, %v347
      %v1036 = vpop.permute.xlu0 %1035
      %v1038 = vlaneseq
      %v1039 = vshrl.u32 %v1038, 7
      %v1040 = vsub.s32 0, %v1039
      %v1041 = vrot.slane %v1017, %v1040
      %v1042 = vmul.f32 %v1021, %v1041
      %v1043 = vmul.f32 %v1026, %v1041
      %v1044 = vmul.f32 %v1031, %v1041
      %v1045 = vmul.f32 %v1036, %v1041
      %1046 = vset.pattern.permute.xlu0 1
      %1047 = vperm.xlu0 %1046, %v344
      %v1048 = vpop.permute.xlu0 %1047
      %1050 = vset.pattern.permute.xlu0 1
      %1051 = vperm.xlu0 %1050, %v345
      %v1052 = vpop.permute.xlu0 %1051
      %1054 = vset.pattern.permute.xlu0 1
      %1055 = vperm.xlu0 %1054, %v346
      %v1056 = vpop.permute.xlu0 %1055
      %1058 = vset.pattern.permute.xlu0 1
      %1059 = vperm.xlu0 %1058, %v347
      %v1060 = vpop.permute.xlu0 %1059
      %v1062 = vlaneseq
      %v1063 = vshrl.u32 %v1062, 7
      %v1064 = vsub.s32 1, %v1063
      %v1065 = vrot.slane %v1017, %v1064
      %v1066 = vmul.f32 %v1048, %v1065
      %v1067 = vmul.f32 %v1052, %v1065
      %v1068 = vmul.f32 %v1056, %v1065
      %v1069 = vmul.f32 %v1060, %v1065
      %v1070 = vadd.f32 %v1042, %v1066
      %v1071 = vadd.f32 %v1043, %v1067
      %v1072 = vadd.f32 %v1044, %v1068
      %v1073 = vadd.f32 %v1045, %v1069
      %1074 = vset.pattern.permute.xlu0 2
      %1075 = vperm.xlu0 %1074, %v344
      %v1076 = vpop.permute.xlu0 %1075
      %1078 = vset.pattern.permute.xlu0 2
      %1079 = vperm.xlu0 %1078, %v345
      %v1080 = vpop.permute.xlu0 %1079
      %1082 = vset.pattern.permute.xlu0 2
      %1083 = vperm.xlu0 %1082, %v346
      %v1084 = vpop.permute.xlu0 %1083
      %1086 = vset.pattern.permute.xlu0 2
      %1087 = vperm.xlu0 %1086, %v347
      %v1088 = vpop.permute.xlu0 %1087
      %v1090 = vlaneseq
      %v1091 = vshrl.u32 %v1090, 7
      %v1092 = vsub.s32 2, %v1091
      %v1093 = vrot.slane %v1017, %v1092
      %v1094 = vmul.f32 %v1076, %v1093
      %v1095 = vmul.f32 %v1080, %v1093
      %v1096 = vmul.f32 %v1084, %v1093
      %v1097 = vmul.f32 %v1088, %v1093
      %v1098 = vadd.f32 %v1070, %v1094
      %v1099 = vadd.f32 %v1071, %v1095
      %v1100 = vadd.f32 %v1072, %v1096
      %v1101 = vadd.f32 %v1073, %v1097
      %1103 = vset.pattern.permute.xlu0 0
      %1104 = vperm.xlu0 %1103, %v348
      %v1105 = vpop.permute.xlu0 %1104
      %1108 = vset.pattern.permute.xlu0 0
      %1109 = vperm.xlu0 %1108, %v349
      %v1110 = vpop.permute.xlu0 %1109
      %1113 = vset.pattern.permute.xlu0 0
      %1114 = vperm.xlu0 %1113, %v350
      %v1115 = vpop.permute.xlu0 %1114
      %1118 = vset.pattern.permute.xlu0 0
      %1119 = vperm.xlu0 %1118, %v351
      %v1120 = vpop.permute.xlu0 %1119
      %v1122 = vadd.f32 %v1098, %v1105
      %v1123 = vadd.f32 %v1099, %v1110
      %v1124 = vadd.f32 %v1100, %v1115
      %v1125 = vadd.f32 %v1101, %v1120
      %v1126 = vmax.f32 %v1122, 0.0
      %v1127 = vmax.f32 %v1123, 0.0
      %v1128 = vmax.f32 %v1124, 0.0
      %v1129 = vmax.f32 %v1125, 0.0
      %1130 = vmax.xlane.f32.xlu0 %v1126
      %v1131 = vpop.xlane.xlu0 %1130
      %1132 = vmax.xlane.f32.xlu0 %v1127
      %v1133 = vpop.xlane.xlu0 %1132
      %1134 = vmax.xlane.f32.xlu0 %v1128
      %v1135 = vpop.xlane.xlu0 %1134
      %1136 = vmax.xlane.f32.xlu0 %v1129
      %v1137 = vpop.xlane.xlu0 %1136
      %v1138 = vmul.f32 %v1131, %v352
      %v1139 = vmul.f32 %v1133, %v353
      %v1140 = vmul.f32 %v1135, %v354
      %v1141 = vmul.f32 %v1137, %v355
      %vm1142 = vcmask 64512
      %v1143 = vsel %vm1142, %v1138, 0.0
      %v1144 = vsel %vm1142, %v1139, 0.0
      %v1145 = vadd.f32 %v1143, %v1144
      %v1146 = vsel %vm1142, %v1140, 0.0
      %v1147 = vadd.f32 %v1145, %v1146
      %v1148 = vsel %vm1142, %v1141, 0.0
      %v1149 = vadd.f32 %v1147, %v1148
      %v1150 = vrot.slane %v1149, 4
      %v1151 = vadd.f32 %v1149, %v1150
      %v1152 = vrot.slane %v1151, 2
      %v1153 = vadd.f32 %v1151, %v1152
      %v1154 = vrot.slane %v1153, 1
      %v1155 = vadd.f32 %v1153, %v1154
      %v1156 = vadd.f32 %v1155, %v356
      %vm1157 = vcmask 57344
      %1158 = vst.msk [vmem:[%s340] sm:$0x1] %vm1157, %v1156
      %1159 = vst [vmem:[%s337] sm:$0x7] %v1017
      %p1160 = scmp.lt.s32.totalorder %s20, 1
      %s1161 = scalar_select %p1160, %s20, 1
      %s1162 = smul.addr %s1161, 4
      %s1163 = scalar_lea.vmem %s7, %s1162
      %p1164 = scmp.lt.s32.totalorder %s20, 1
      %s1165 = scalar_select %p1164, %s20, 1
      %s1166 = scalar_lea.vmem %s8, %s1165
      // Predicated region
      $region56: #{siadv_attack_forward.1} parent=47 // pred_check
        %p1167 = pneg %p200
      $region57: #{siadv_attack_forward.1} parent=47 // pred_check_branch
        %1169 = sbr.rel (%p1167) target = $region59
      $region58: #{siadv_attack_forward.1} parent=47 // pred_region
        _
      $region59: #{siadv_attack_forward.1} parent=47 // pred_fallthru
        _
      // Predicated region
      $region60: #{siadv_attack_forward.1} parent=47 // pred_check
        %p1170 = pneg %p226
      $region61: #{siadv_attack_forward.1} parent=47 // pred_check_branch
        %1172 = sbr.rel (%p1170) target = $region63
      $region62: #{siadv_attack_forward.1} parent=47 // pred_region
        _
      $region63: #{siadv_attack_forward.1} parent=47 // pred_fallthru
        _
    $region48: #{siadv_attack_forward.1} parent=5 // pred_fallthru
      _
    %p1173 = scmp.le.s32.totalorder 2, %s15
    // Predicated region
    $region64: #{siadv_attack_forward.1} parent=5 // pred_check
      %p1174 = pneg %p1173
    $region65: #{siadv_attack_forward.1} parent=5 // pred_check_branch
      %1176 = sbr.rel (%p1174) target = $region67
    $region66: #{siadv_attack_forward.1} parent=5 // pred_region
      %s1177 = ssub.s32 %s15, 2
      // Predicated region
      $region68: #{siadv_attack_forward.1} parent=66 // pred_check
        %p1178 = pneg %p206
      $region69: #{siadv_attack_forward.1} parent=66 // pred_check_branch
        %1180 = sbr.rel (%p1178) target = $region71
      $region70: #{siadv_attack_forward.1} parent=66 // pred_region
        %p1181 = scmp.lt.s32.totalorder %s21, 1
        %s1182 = scalar_select %p1181, %s21, 1
        %s1183 = smul.addr %s1182, 4
        %s1184 = scalar_lea.vmem %s7, %s1183
      $region71: #{siadv_attack_forward.1} parent=66 // pred_fallthru
        _
      // Predicated region
      $region72: #{siadv_attack_forward.1} parent=66 // pred_check
        %p1185 = pneg %p232
      $region73: #{siadv_attack_forward.1} parent=66 // pred_check_branch
        %1187 = sbr.rel (%p1185) target = $region75
      $region74: #{siadv_attack_forward.1} parent=66 // pred_region
        %p1188 = scmp.lt.s32.totalorder %s21, 1
        %s1189 = scalar_select %p1188, %s21, 1
        %s1190 = scalar_lea.vmem %s8, %s1189
      $region75: #{siadv_attack_forward.1} parent=66 // pred_fallthru
        _
    $region67: #{siadv_attack_forward.1} parent=5 // pred_fallthru
      _
  $region6: #{siadv_attack_forward.1} parent=0 // loop_footer
    %s19 = sadd.s32 1, %s15
  $region7: #{siadv_attack_forward.1} parent=0 // loop_footer_branch
    %14 = sbr.rel target = $region3
  $region8: #{siadv_attack_forward.1} parent=0 // loop_exit
    _

</llo_original>
